<compile_context>
chip_gen: v5e
topology: v5e:2x2
jax: 0.10.0
libtpu: 0.0.40
codegen_flags: <defaults>
</compile_context>

<pallas_src>
import functools
import math

import jax
import jax.numpy as jnp
from jax.experimental import pallas as pl
from jax.experimental.pallas import tpu as pltpu


_LN_EPS = 1e-6
_GELU_C = math.sqrt(2.0 / math.pi)


def _layer_norm(x, gamma, beta, eps=_LN_EPS):
    mean = jnp.mean(x, axis=-1, keepdims=True)
    var = jnp.mean((x - mean) ** 2, axis=-1, keepdims=True)
    return (x - mean) * jax.lax.rsqrt(var + eps) * gamma + beta


def _gelu(x):
    # PreSumm uses the tanh approximation of GELU.
    return 0.5 * x * (1.0 + jnp.tanh(_GELU_C * (x + 0.044715 * x ** 3)))


# -----------------------------------------------------------------------------
# One-time feature / hardware probes (no per-call fallbacks, nothing swallowed
# from the real kernel's compilation).
# -----------------------------------------------------------------------------
_SINGLE_BUFFER_OK = None


def _single_buffer_supported():
    """Detect pl.Buffered(1) (single-buffered constant weight blocks) ONCE."""
    global _SINGLE_BUFFER_OK
    if _SINGLE_BUFFER_OK is not None:
        return _SINGLE_BUFFER_OK
    ok = False
    if hasattr(pl, "Buffered"):
        try:
            def _probe(x_ref, o_ref):
                o_ref[...] = x_ref[...]
            fn = pl.pallas_call(
                _probe,
                out_shape=jax.ShapeDtypeStruct((8, 128), jnp.float32),
                grid=(1,),
                in_specs=[pl.BlockSpec((8, 128), lambda i: (0, 0),
                                       pipeline_mode=pl.Buffered(1))],
                out_specs=pl.BlockSpec((8, 128), lambda i: (0, 0)),
            )
            jax.jit(fn).lower(jax.ShapeDtypeStruct((8, 128), jnp.float32)).compile()
            ok = True
        except Exception:   # feature probe only
            ok = False
    _SINGLE_BUFFER_OK = ok
    return ok


def _vmem_capacity_bytes():
    try:
        return int(pltpu.get_tpu_info().vmem_capacity_bytes)
    except Exception:
        return 64 << 20   # conservative: v7x per-core VMEM


def _vmem_limit(weight_bytes, block_bytes, scratch_bytes):
    cap = _vmem_capacity_bytes()
    budget = 2 * weight_bytes + 2 * block_bytes + scratch_bytes + (8 << 20)
    return int(min(max(budget, 32 << 20), int(0.8 * cap)))


def _const_spec(shape):
    """BlockSpec for a grid-constant (weight) block; single-buffered if supported."""
    index_map = lambda b, _nd=len(shape): (0,) * _nd
    if _single_buffer_supported():
        return pl.BlockSpec(shape, index_map, pipeline_mode=pl.Buffered(1))
    return pl.BlockSpec(shape, index_map)


def _nbytes(*arrays):
    return sum(int(a.size) * a.dtype.itemsize for a in arrays)


def _row_block(rows, target=256):
    """Largest multiple of 8 that divides `rows`, capped at `target`."""
    tb = min(rows, target)
    while rows % tb:
        tb -= 8
    return max(tb, 8)


# -----------------------------------------------------------------------------
# Kernel A: LayerNorm + fused score/value projection + masked softmax + pooling.
# -----------------------------------------------------------------------------
def _pooling_kernel(x_ref, maskb_ref, ln1_g_ref, ln1_b_ref,
                    wkv_ref, bkv_ref, expand_ref, ctx_ref):
    TB, S, D = x_ref.shape
    H = expand_ref.shape[0]

    x = x_ref[...].astype(jnp.float32)                                     # (TB, S, D)
    x_norm = _layer_norm(x, ln1_g_ref[...], ln1_b_ref[...])                # f32

    # One fused projection [Wv | Wk]: M = TB*S MXU rows, lane-dense N = D+H.
    xn2 = x_norm.reshape(TB * S, D).astype(jnp.bfloat16)
    proj = jnp.dot(xn2, wkv_ref[...],
                   preferred_element_type=jnp.float32) + bkv_ref[...]      # (TB*S, D+H)
    values = proj[:, :D].reshape(TB, S, D)                                 # (TB, S, D)
    scores = proj[:, D:].reshape(TB, S, H)                                 # (TB, S, H)

    # Additive mask bias (== masked_fill(mask != 0, -1e18)), softmax over S / head.
    scores = scores + maskb_ref[...]
    scores = scores - jnp.max(scores, axis=1, keepdims=True)
    p = jnp.exp(scores)
    attn = p * pl.reciprocal(jnp.sum(p, axis=1, keepdims=True), approx=True)
    # TODO(synk): attention / output dropout are identity (eval mode).

    # Pool: context[b, h*dk + d] = sum_s attn[b, s, h] * values[b, s, h*dk + d].
    # Expand (.., H) -> (.., D) with a 0/1 matmul so multiply + reduce stay lane-dense.
    attn_full = jnp.dot(attn.reshape(TB * S, H).astype(jnp.bfloat16), expand_ref[...],
                        preferred_element_type=jnp.float32).reshape(TB, S, D)
    # TODO(synk): on v6e/v7x this elementwise multiply could stay bf16 (f32 accumulate).
    ctx_ref[...] = jnp.sum(attn_full * values, axis=1).astype(ctx_ref.dtype)   # (TB, D)


# -----------------------------------------------------------------------------
# Kernel B: final_linear + PositionwiseFeedForward, batched over rows.
# -----------------------------------------------------------------------------
def _output_head_kernel(ctx_ref, wo_ref, bo_ref, ln2_g_ref, ln2_b_ref,
                        w1_ref, b1_ref, w2_ref, b2_ref, o_ref):
    context = ctx_ref[...]                                                  # (TB, D) f32
    attn_out = jnp.dot(context.astype(jnp.bfloat16), wo_ref[...],
                       preferred_element_type=jnp.float32) + bo_ref[...]    # final_linear
    ffn_in = _layer_norm(attn_out, ln2_g_ref[...], ln2_b_ref[...])
    inter = _gelu(jnp.dot(ffn_in.astype(jnp.bfloat16), w1_ref[...],
                          preferred_element_type=jnp.float32) + b1_ref[...])   # (TB, d_ff)
    ffn_out = jnp.dot(inter.astype(jnp.bfloat16), w2_ref[...],
                      preferred_element_type=jnp.float32) + b2_ref[...]        # (TB, D)
    o_ref[...] = (ffn_out + attn_out).astype(o_ref.dtype)
    # TODO(synk): for very large d_ff (v7x 64 MiB VMEM) add an 'arbitrary' grid axis
    #             tiling W1/W2 over d_ff and accumulate ffn_out per tile.


@functools.partial(jax.jit, static_argnames=("heads", "batch_block"))
def transformer_pooling_layer(params, inputs, mask, *, heads, batch_block=8):
    """TransformerPoolingLayer.forward(inputs, mask), eval mode.

    inputs: (B, S, D) float32.  mask: (B, S), nonzero == masked (padding) position.
    Returns (B, D) float32."""
    B, S, D = inputs.shape
    assert D % heads == 0
    dk = D // heads
    d_ff = params["w1"].shape[1]

    # ---- batch blocking: TB rows per grid step (sublane-dense output stores) ----
    TB = batch_block
    B_pad = ((B + TB - 1) // TB) * TB
    if B_pad != B:
        inputs = jnp.pad(inputs, ((0, B_pad - B), (0, 0), (0, 0)))
        mask = jnp.pad(mask, ((0, B_pad - B), (0, 0)), constant_values=1)

    # ---- host-side operand prep (zero in-kernel cost) ---------------------------
    x_bf = inputs.astype(jnp.bfloat16)               # halve the dominant HBM stream
    mask_bias = jnp.where(mask != 0, -1e18, 0.0).astype(jnp.float32).reshape(B_pad, S, 1)

    j = jnp.arange(D)
    # Fold MultiHeadedPooling's unshape (head,dim)->(dim,head) interleave into the
    # final_linear weight rows: kernel context index j = h*dk + d corresponds to
    # the PyTorch unshaped index d*heads + h.
    wo_perm = params["wo"][(j % dk) * heads + j // dk, :]
    # 0/1 matrix expanding per-head attention (.., H) to lane-dense (.., D).
    expand = (jnp.arange(heads)[:, None] == j[None, :] // dk).astype(jnp.bfloat16)
    # Fused projection weight [Wv | Wk] -> one (D, D+H) matmul, sliced in-kernel.
    wkv = jnp.concatenate([params["wv"], params["wk"]], axis=1).astype(jnp.bfloat16)
    bkv = jnp.concatenate([params["bv"], params["bk"]], axis=1)

    # ---- kernel A: pooling -> (B_pad, D) contexts -------------------------------
    pool_operands = (x_bf, mask_bias,
                     params["ln1_g"], params["ln1_b"], wkv, bkv, expand)
    weight_a = _nbytes(*pool_operands[2:])
    block_a = TB * S * (D * 2 + 128 * 4) + TB * D * 4   # bf16 x + lane-padded mask + ctx
    scratch_a = 6 * TB * S * D * 4                      # live f32 temporaries
    cost_a = pl.CostEstimate(
        flops=2 * B_pad * S * D * (D + 2 * heads + 2),
        transcendentals=B_pad * S * (heads + 1),
        bytes_accessed=_nbytes(*pool_operands) + B_pad * D * 4)

    context = pl.pallas_call(
        _pooling_kernel,
        out_shape=jax.ShapeDtypeStruct((B_pad, D), jnp.float32),
        grid=(B_pad // TB,),
        in_specs=[
            pl.BlockSpec((TB, S, D), lambda b: (b, 0, 0)),    # inputs (bf16)
            pl.BlockSpec((TB, S, 1), lambda b: (b, 0, 0)),    # additive mask bias
            _const_spec((1, D)), _const_spec((1, D)),         # LayerNorm gamma / beta
            _const_spec((D, D + heads)),                      # [Wv | Wk] fused
            _const_spec((1, D + heads)),                      # [bv | bk] fused
            _const_spec((heads, D)),                          # head-expand 0/1 matrix
        ],
        out_specs=pl.BlockSpec((TB, D), lambda b: (b, 0)),
        compiler_params=pltpu.CompilerParams(
            dimension_semantics=("parallel",),
            vmem_limit_bytes=_vmem_limit(weight_a, block_a, scratch_a)),
        cost_estimate=cost_a,
    )(*pool_operands)
    # TODO(synk): for very long S add an online-softmax S-tile grid axis so the
    #             (TB, S, D) f32 temporaries stay bounded (v7x 64 MiB VMEM).

    # ---- kernel B: final_linear + FFN with M = TB_ffn rows (dense MXU rows) -----
    TB_ffn = _row_block(B_pad)
    ffn_operands = (context,
                    wo_perm.astype(jnp.bfloat16), params["bo"],
                    params["ln2_g"], params["ln2_b"],
                    params["w1"].astype(jnp.bfloat16), params["b1"],
                    params["w2"].astype(jnp.bfloat16), params["b2"])
    weight_b = _nbytes(*ffn_operands[1:])
    block_b = 2 * TB_ffn * D * 4
    scratch_b = TB_ffn * (d_ff + 4 * D) * 4
    cost_b = pl.CostEstimate(
        flops=2 * B_pad * D * (D + 2 * d_ff),
        transcendentals=B_pad * (d_ff + 2),
        bytes_accessed=_nbytes(*ffn_operands) + B_pad * D * 4)

    out = pl.pallas_call(
        _output_head_kernel,
        out_shape=jax.ShapeDtypeStruct((B_pad, D), inputs.dtype),
        grid=(B_pad // TB_ffn,),
        in_specs=[
            pl.BlockSpec((TB_ffn, D), lambda b: (b, 0)),      # pooled contexts
            _const_spec((D, D)), _const_spec((1, D)),         # Wo (unshape folded), bo
            _const_spec((1, D)), _const_spec((1, D)),         # FFN LayerNorm gamma / beta
            _const_spec((D, d_ff)), _const_spec((1, d_ff)),   # W1, b1
            _const_spec((d_ff, D)), _const_spec((1, D)),      # W2, b2
        ],
        out_specs=pl.BlockSpec((TB_ffn, D), lambda b: (b, 0)),
        compiler_params=pltpu.CompilerParams(
            # NOTE(v7x): 'parallel' shards this axis across both TensorCores; each
            # core then needs its own resident copy of Wo/W1/W2 in its 64 MiB VMEM.
            dimension_semantics=("parallel",),
            vmem_limit_bytes=_vmem_limit(weight_b, block_b, scratch_b)),
        cost_estimate=cost_b,
    )(*ffn_operands)

    return out[:B]


# -----------------------------------------------------------------------------
# Pure-JAX f32 reference mirroring the PyTorch module exactly (incl. unshape).
# -----------------------------------------------------------------------------
def _reference_forward(params, inputs, mask, *, heads):
    B, S, D = inputs.shape
    dk = D // heads
    xn = _layer_norm(inputs, params["ln1_g"][0], params["ln1_b"][0])
    scores = xn @ params["wk"] + params["bk"][0]                              # (B, S, H)
    values = xn @ params["wv"] + params["bv"][0]                              # (B, S, D)
    scores = jnp.transpose(scores, (0, 2, 1))                                 # (B, H, S)
    values = jnp.transpose(values.reshape(B, S, heads, dk), (0, 2, 1, 3))     # (B, H, S, dk)
    scores = jnp.where(mask[:, None, :] != 0, -1e18, scores)
    attn = jax.nn.softmax(scores, axis=-1)
    context = jnp.sum(attn[..., None] * values, axis=-2)                      # (B, H, dk)
    context = jnp.transpose(context, (0, 2, 1)).reshape(B, D)                 # unshape (d-major)
    attn_out = context @ params["wo"] + params["bo"][0]                       # final_linear
    ffn_in = _layer_norm(attn_out, params["ln2_g"][0], params["ln2_b"][0])
    inter = _gelu(ffn_in @ params["w1"] + params["b1"][0])
    return inter @ params["w2"] + params["b2"][0] + attn_out


def init_params(key, d_model, d_ff, heads):
    ks = jax.random.split(key, 14)
    w = lambda k, shape, s=0.02: (s * jax.random.normal(k, shape)).astype(jnp.float32)
    return dict(
        ln1_g=1.0 + w(ks[0], (1, d_model)), ln1_b=w(ks[1], (1, d_model)),
        wk=w(ks[2], (d_model, heads)),      bk=w(ks[3], (1, heads)),
        wv=w(ks[4], (d_model, d_model)),    bv=w(ks[5], (1, d_model)),
        wo=w(ks[6], (d_model, d_model)),    bo=w(ks[7], (1, d_model)),
        ln2_g=1.0 + w(ks[8], (1, d_model)), ln2_b=w(ks[9], (1, d_model)),
        w1=w(ks[10], (d_model, d_ff)),      b1=w(ks[11], (1, d_ff)),
        w2=w(ks[12], (d_ff, d_model)),      b2=w(ks[13], (1, d_model)),
    )


if __name__ == "__main__":
    B, S, D, HEADS, D_FF = 2, 16, 128, 4, 256   # small but lane-dense (D, d_ff % 128 == 0)

    key = jax.random.PRNGKey(0)
    kp, kx = jax.random.split(key)
    params = init_params(kp, D, D_FF, HEADS)

    x = jax.random.normal(kx, (B, S, D), jnp.float32)
    # Padding mask: last 4 key positions of batch 1 are masked (nonzero == masked).
    mask = jnp.zeros((B, S), jnp.int32).at[1, 12:].set(1)

    out = transformer_pooling_layer(params, x, mask, heads=HEADS)
    out = jax.block_until_ready(out)
    assert out.shape == (B, D) and out.dtype == jnp.float32
    assert bool(jnp.all(jnp.isfinite(out)))

    ref = _reference_forward(params, x, mask, heads=HEADS)
    err = float(jnp.max(jnp.abs(out - ref)))
    assert err < 5e-2, f"max |kernel - reference| = {err}"
    print("KERNEL_OK")
</pallas_src>

<mosaic_0001>
module attributes {stable_mosaic.version = 11 : i64} {
  func.func @_pooling_kernel(%arg0: i32, %arg1: memref<8x16x128xbf16, #tpu.memory_space<vmem>>, %arg2: memref<8x16x1xf32, #tpu.memory_space<vmem>>, %arg3: memref<1x128xf32, #tpu.memory_space<vmem>>, %arg4: memref<1x128xf32, #tpu.memory_space<vmem>>, %arg5: memref<128x132xbf16, #tpu.memory_space<vmem>>, %arg6: memref<1x132xf32, #tpu.memory_space<vmem>>, %arg7: memref<4x128xbf16, #tpu.memory_space<vmem>>, %arg8: memref<8x128xf32, #tpu.memory_space<vmem>>) attributes {dimension_semantics = [#tpu.dimension_semantics<parallel>], iteration_bounds = array<i64: 1>, scalar_prefetch = 0 : i64, scratch_operands = 0 : i64, tpu.core_type = #tpu.core_type<tc>, window_params = [{transform_indices = @transform_0, window_bounds = array<i64: 8, 16, 128>}, {transform_indices = @transform_1, window_bounds = array<i64: 8, 16, 1>}, {pipeline_mode = #tpu.pipeline_mode<synchronous>, transform_indices = @transform_2, window_bounds = array<i64: 1, 128>}, {pipeline_mode = #tpu.pipeline_mode<synchronous>, transform_indices = @transform_3, window_bounds = array<i64: 1, 128>}, {pipeline_mode = #tpu.pipeline_mode<synchronous>, transform_indices = @transform_4, window_bounds = array<i64: 128, 132>}, {pipeline_mode = #tpu.pipeline_mode<synchronous>, transform_indices = @transform_5, window_bounds = array<i64: 1, 132>}, {pipeline_mode = #tpu.pipeline_mode<synchronous>, transform_indices = @transform_6, window_bounds = array<i64: 4, 128>}, {transform_indices = @transform_7, window_bounds = array<i64: 8, 128>}]} {
    %c0 = arith.constant 0 : index
    %c0_0 = arith.constant 0 : index
    %c0_1 = arith.constant 0 : index
    %0 = vector.load %arg1[%c0, %c0_0, %c0_1] : memref<8x16x128xbf16, #tpu.memory_space<vmem>>, vector<8x16x128xbf16>
    %1 = arith.extf %0 : vector<8x16x128xbf16> to vector<8x16x128xf32>
    %c0_2 = arith.constant 0 : index
    %c0_3 = arith.constant 0 : index
    %2 = vector.load %arg3[%c0_2, %c0_3] : memref<1x128xf32, #tpu.memory_space<vmem>>, vector<1x128xf32>
    %c0_4 = arith.constant 0 : index
    %c0_5 = arith.constant 0 : index
    %3 = vector.load %arg4[%c0_4, %c0_5] : memref<1x128xf32, #tpu.memory_space<vmem>>, vector<1x128xf32>
    %cst = arith.constant dense<0.000000e+00> : vector<8x16xf32>
    %4 = vector.multi_reduction <add>, %1, %cst [2] : vector<8x16x128xf32> to vector<8x16xf32>
    %5 = vector.shape_cast %4 : vector<8x16xf32> to vector<8x16x1xf32>
    %cst_6 = arith.constant 1.280000e+02 : f32
    %6 = vector.broadcast %cst_6 : f32 to vector<8x16x1xf32>
    %7 = arith.divf %5, %6 : vector<8x16x1xf32>
    %8 = vector.broadcast %7 : vector<8x16x1xf32> to vector<8x16x128xf32>
    %9 = arith.subf %1, %8 : vector<8x16x128xf32>
    %10 = arith.mulf %9, %9 : vector<8x16x128xf32>
    %cst_7 = arith.constant dense<0.000000e+00> : vector<8x16xf32>
    %11 = vector.multi_reduction <add>, %10, %cst_7 [2] : vector<8x16x128xf32> to vector<8x16xf32>
    %12 = vector.shape_cast %11 : vector<8x16xf32> to vector<8x16x1xf32>
    %cst_8 = arith.constant 1.280000e+02 : f32
    %13 = vector.broadcast %cst_8 : f32 to vector<8x16x1xf32>
    %14 = arith.divf %12, %13 : vector<8x16x1xf32>
    %15 = vector.broadcast %7 : vector<8x16x1xf32> to vector<8x16x128xf32>
    %16 = arith.subf %1, %15 : vector<8x16x128xf32>
    %cst_9 = arith.constant 9.99999997E-7 : f32
    %17 = vector.broadcast %cst_9 : f32 to vector<8x16x1xf32>
    %18 = arith.addf %14, %17 : vector<8x16x1xf32>
    %19 = math.rsqrt %18 : vector<8x16x1xf32>
    %20 = vector.broadcast %19 : vector<8x16x1xf32> to vector<8x16x128xf32>
    %21 = arith.mulf %16, %20 : vector<8x16x128xf32>
    %22 = vector.shape_cast %2 : vector<1x128xf32> to vector<1x1x128xf32>
    %23 = vector.broadcast %22 : vector<1x1x128xf32> to vector<8x16x128xf32>
    %24 = arith.mulf %21, %23 : vector<8x16x128xf32>
    %25 = vector.shape_cast %3 : vector<1x128xf32> to vector<1x1x128xf32>
    %26 = vector.broadcast %25 : vector<1x1x128xf32> to vector<8x16x128xf32>
    %27 = arith.addf %24, %26 : vector<8x16x128xf32>
    %28 = vector.shape_cast %27 : vector<8x16x128xf32> to vector<128x128xf32>
    %29 = arith.truncf %28 : vector<128x128xf32> to vector<128x128xbf16>
    %c0_10 = arith.constant 0 : index
    %c0_11 = arith.constant 0 : index
    %30 = vector.load %arg5[%c0_10, %c0_11] : memref<128x132xbf16, #tpu.memory_space<vmem>>, vector<128x132xbf16>
    %cst_12 = arith.constant dense<0.000000e+00> : vector<128x132xf32>
    %31 = tpu.matmul %29, %30, %cst_12 {dimension_numbers = #tpu.dot_dimension_numbers<[1], [0], [0], [1], [0, 0, 1, 1], [], []>} : vector<128x128xbf16>, vector<128x132xbf16>, vector<128x132xf32> -> vector<128x132xf32>
    %c0_13 = arith.constant 0 : index
    %c0_14 = arith.constant 0 : index
    %32 = vector.load %arg6[%c0_13, %c0_14] : memref<1x132xf32, #tpu.memory_space<vmem>>, vector<1x132xf32>
    %33 = vector.broadcast %32 : vector<1x132xf32> to vector<128x132xf32>
    %34 = arith.addf %31, %33 : vector<128x132xf32>
    %35 = vector.extract_strided_slice %34 {offsets = [0, 0], sizes = [128, 128], strides = [1, 1]} : vector<128x132xf32> to vector<128x128xf32>
    %36 = vector.shape_cast %35 : vector<128x128xf32> to vector<8x16x128xf32>
    %37 = vector.extract_strided_slice %34 {offsets = [0, 128], sizes = [128, 4], strides = [1, 1]} : vector<128x132xf32> to vector<128x4xf32>
    %38 = vector.shape_cast %37 : vector<128x4xf32> to vector<8x16x4xf32>
    %c0_15 = arith.constant 0 : index
    %c0_16 = arith.constant 0 : index
    %c0_17 = arith.constant 0 : index
    %39 = vector.load %arg2[%c0_15, %c0_16, %c0_17] : memref<8x16x1xf32, #tpu.memory_space<vmem>>, vector<8x16x1xf32>
    %40 = vector.broadcast %39 : vector<8x16x1xf32> to vector<8x16x4xf32>
    %41 = arith.addf %38, %40 : vector<8x16x4xf32>
    %cst_18 = arith.constant dense<0xFF800000> : vector<8x4xf32>
    %42 = vector.multi_reduction <maximumf>, %41, %cst_18 [1] : vector<8x16x4xf32> to vector<8x4xf32>
    %43 = vector.shape_cast %42 : vector<8x4xf32> to vector<8x1x4xf32>
    %44 = vector.broadcast %43 : vector<8x1x4xf32> to vector<8x16x4xf32>
    %45 = arith.subf %41, %44 : vector<8x16x4xf32>
    %46 = math.exp %45 : vector<8x16x4xf32>
    %cst_19 = arith.constant dense<0.000000e+00> : vector<8x4xf32>
    %47 = vector.multi_reduction <add>, %46, %cst_19 [1] : vector<8x16x4xf32> to vector<8x4xf32>
    %48 = vector.shape_cast %47 : vector<8x4xf32> to vector<8x1x4xf32>
    %49 = tpu.reciprocal %48 {approx = true} : vector<8x1x4xf32> -> vector<8x1x4xf32>
    %50 = vector.broadcast %49 : vector<8x1x4xf32> to vector<8x16x4xf32>
    %51 = arith.mulf %46, %50 : vector<8x16x4xf32>
    %52 = vector.shape_cast %51 : vector<8x16x4xf32> to vector<128x4xf32>
    %53 = arith.truncf %52 : vector<128x4xf32> to vector<128x4xbf16>
    %c0_20 = arith.constant 0 : index
    %c0_21 = arith.constant 0 : index
    %54 = vector.load %arg7[%c0_20, %c0_21] : memref<4x128xbf16, #tpu.memory_space<vmem>>, vector<4x128xbf16>
    %cst_22 = arith.constant dense<0.000000e+00> : vector<128x128xf32>
    %55 = tpu.matmul %53, %54, %cst_22 {dimension_numbers = #tpu.dot_dimension_numbers<[1], [0], [0], [1], [0, 0, 1, 1], [], []>} : vector<128x4xbf16>, vector<4x128xbf16>, vector<128x128xf32> -> vector<128x128xf32>
    %56 = vector.shape_cast %55 : vector<128x128xf32> to vector<8x16x128xf32>
    %57 = arith.mulf %56, %36 : vector<8x16x128xf32>
    %cst_23 = arith.constant dense<0.000000e+00> : vector<8x128xf32>
    %58 = vector.multi_reduction <add>, %57, %cst_23 [1] : vector<8x16x128xf32> to vector<8x128xf32>
    %c0_24 = arith.constant 0 : index
    %c0_25 = arith.constant 0 : index
    %59 = vector.load %arg8[%c0_24, %c0_25] : memref<8x128xf32, #tpu.memory_space<vmem>>, vector<8x128xf32>
    tpu.vector_store %arg8[%c0_24, %c0_25], %58 {strides = array<i32>} : memref<8x128xf32, #tpu.memory_space<vmem>>, vector<8x128xf32>,
    return
  }
  func.func @transform_0(%arg0: i32) -> (i32, i32, i32) {
    %c0_i32 = arith.constant 0 : i32
    %c0_i32_0 = arith.constant 0 : i32
    %c0_i32_1 = arith.constant 0 : i32
    return %arg0, %c0_i32, %c0_i32_0 : i32, i32, i32
  }
  func.func @transform_1(%arg0: i32) -> (i32, i32, i32) {
    %c0_i32 = arith.constant 0 : i32
    %c0_i32_0 = arith.constant 0 : i32
    %c0_i32_1 = arith.constant 0 : i32
    return %arg0, %c0_i32, %c0_i32_0 : i32, i32, i32
  }
  func.func @transform_2(%arg0: i32) -> (i32, i32) {
    %c0_i32 = arith.constant 0 : i32
    %c0_i32_0 = arith.constant 0 : i32
    %c0_i32_1 = arith.constant 0 : i32
    return %c0_i32, %c0_i32_0 : i32, i32
  }
  func.func @transform_3(%arg0: i32) -> (i32, i32) {
    %c0_i32 = arith.constant 0 : i32
    %c0_i32_0 = arith.constant 0 : i32
    %c0_i32_1 = arith.constant 0 : i32
    return %c0_i32, %c0_i32_0 : i32, i32
  }
  func.func @transform_4(%arg0: i32) -> (i32, i32) {
    %c0_i32 = arith.constant 0 : i32
    %c0_i32_0 = arith.constant 0 : i32
    %c0_i32_1 = arith.constant 0 : i32
    return %c0_i32, %c0_i32_0 : i32, i32
  }
  func.func @transform_5(%arg0: i32) -> (i32, i32) {
    %c0_i32 = arith.constant 0 : i32
    %c0_i32_0 = arith.constant 0 : i32
    %c0_i32_1 = arith.constant 0 : i32
    return %c0_i32, %c0_i32_0 : i32, i32
  }
  func.func @transform_6(%arg0: i32) -> (i32, i32) {
    %c0_i32 = arith.constant 0 : i32
    %c0_i32_0 = arith.constant 0 : i32
    %c0_i32_1 = arith.constant 0 : i32
    return %c0_i32, %c0_i32_0 : i32, i32
  }
  func.func @transform_7(%arg0: i32) -> (i32, i32) {
    %c0_i32 = arith.constant 0 : i32
    %c0_i32_0 = arith.constant 0 : i32
    return %arg0, %c0_i32 : i32, i32
  }
}

module attributes {stable_mosaic.version = 11 : i64} {
  func.func @_output_head_kernel(%arg0: i32, %arg1: memref<8x128xf32, #tpu.memory_space<vmem>>, %arg2: memref<128x128xbf16, #tpu.memory_space<vmem>>, %arg3: memref<1x128xf32, #tpu.memory_space<vmem>>, %arg4: memref<1x128xf32, #tpu.memory_space<vmem>>, %arg5: memref<1x128xf32, #tpu.memory_space<vmem>>, %arg6: memref<128x256xbf16, #tpu.memory_space<vmem>>, %arg7: memref<1x256xf32, #tpu.memory_space<vmem>>, %arg8: memref<256x128xbf16, #tpu.memory_space<vmem>>, %arg9: memref<1x128xf32, #tpu.memory_space<vmem>>, %arg10: memref<8x128xf32, #tpu.memory_space<vmem>>) attributes {dimension_semantics = [#tpu.dimension_semantics<parallel>], iteration_bounds = array<i64: 1>, scalar_prefetch = 0 : i64, scratch_operands = 0 : i64, tpu.core_type = #tpu.core_type<tc>, window_params = [{transform_indices = @transform_0, window_bounds = array<i64: 8, 128>}, {pipeline_mode = #tpu.pipeline_mode<synchronous>, transform_indices = @transform_1, window_bounds = array<i64: 128, 128>}, {pipeline_mode = #tpu.pipeline_mode<synchronous>, transform_indices = @transform_2, window_bounds = array<i64: 1, 128>}, {pipeline_mode = #tpu.pipeline_mode<synchronous>, transform_indices = @transform_3, window_bounds = array<i64: 1, 128>}, {pipeline_mode = #tpu.pipeline_mode<synchronous>, transform_indices = @transform_4, window_bounds = array<i64: 1, 128>}, {pipeline_mode = #tpu.pipeline_mode<synchronous>, transform_indices = @transform_5, window_bounds = array<i64: 128, 256>}, {pipeline_mode = #tpu.pipeline_mode<synchronous>, transform_indices = @transform_6, window_bounds = array<i64: 1, 256>}, {pipeline_mode = #tpu.pipeline_mode<synchronous>, transform_indices = @transform_7, window_bounds = array<i64: 256, 128>}, {pipeline_mode = #tpu.pipeline_mode<synchronous>, transform_indices = @transform_8, window_bounds = array<i64: 1, 128>}, {transform_indices = @transform_9, window_bounds = array<i64: 8, 128>}]} {
    %c0 = arith.constant 0 : index
    %c0_0 = arith.constant 0 : index
    %0 = vector.load %arg1[%c0, %c0_0] : memref<8x128xf32, #tpu.memory_space<vmem>>, vector<8x128xf32>
    %1 = arith.truncf %0 : vector<8x128xf32> to vector<8x128xbf16>
    %c0_1 = arith.constant 0 : index
    %c0_2 = arith.constant 0 : index
    %2 = vector.load %arg2[%c0_1, %c0_2] : memref<128x128xbf16, #tpu.memory_space<vmem>>, vector<128x128xbf16>
    %cst = arith.constant dense<0.000000e+00> : vector<8x128xf32>
    %3 = tpu.matmul %1, %2, %cst {dimension_numbers = #tpu.dot_dimension_numbers<[1], [0], [0], [1], [0, 0, 1, 1], [], []>} : vector<8x128xbf16>, vector<128x128xbf16>, vector<8x128xf32> -> vector<8x128xf32>
    %c0_3 = arith.constant 0 : index
    %c0_4 = arith.constant 0 : index
    %4 = vector.load %arg3[%c0_3, %c0_4] : memref<1x128xf32, #tpu.memory_space<vmem>>, vector<1x128xf32>
    %5 = vector.broadcast %4 : vector<1x128xf32> to vector<8x128xf32>
    %6 = arith.addf %3, %5 : vector<8x128xf32>
    %c0_5 = arith.constant 0 : index
    %c0_6 = arith.constant 0 : index
    %7 = vector.load %arg4[%c0_5, %c0_6] : memref<1x128xf32, #tpu.memory_space<vmem>>, vector<1x128xf32>
    %c0_7 = arith.constant 0 : index
    %c0_8 = arith.constant 0 : index
    %8 = vector.load %arg5[%c0_7, %c0_8] : memref<1x128xf32, #tpu.memory_space<vmem>>, vector<1x128xf32>
    %cst_9 = arith.constant dense<0.000000e+00> : vector<8xf32>
    %9 = vector.multi_reduction <add>, %6, %cst_9 [1] : vector<8x128xf32> to vector<8xf32>
    %10 = vector.shape_cast %9 : vector<8xf32> to vector<8x1xf32>
    %cst_10 = arith.constant 1.280000e+02 : f32
    %11 = vector.broadcast %cst_10 : f32 to vector<8x1xf32>
    %12 = arith.divf %10, %11 : vector<8x1xf32>
    %13 = vector.broadcast %12 : vector<8x1xf32> to vector<8x128xf32>
    %14 = arith.subf %6, %13 : vector<8x128xf32>
    %15 = arith.mulf %14, %14 : vector<8x128xf32>
    %cst_11 = arith.constant dense<0.000000e+00> : vector<8xf32>
    %16 = vector.multi_reduction <add>, %15, %cst_11 [1] : vector<8x128xf32> to vector<8xf32>
    %17 = vector.shape_cast %16 : vector<8xf32> to vector<8x1xf32>
    %cst_12 = arith.constant 1.280000e+02 : f32
    %18 = vector.broadcast %cst_12 : f32 to vector<8x1xf32>
    %19 = arith.divf %17, %18 : vector<8x1xf32>
    %20 = vector.broadcast %12 : vector<8x1xf32> to vector<8x128xf32>
    %21 = arith.subf %6, %20 : vector<8x128xf32>
    %cst_13 = arith.constant 9.99999997E-7 : f32
    %22 = vector.broadcast %cst_13 : f32 to vector<8x1xf32>
    %23 = arith.addf %19, %22 : vector<8x1xf32>
    %24 = math.rsqrt %23 : vector<8x1xf32>
    %25 = vector.broadcast %24 : vector<8x1xf32> to vector<8x128xf32>
    %26 = arith.mulf %21, %25 : vector<8x128xf32>
    %27 = vector.broadcast %7 : vector<1x128xf32> to vector<8x128xf32>
    %28 = arith.mulf %26, %27 : vector<8x128xf32>
    %29 = vector.broadcast %8 : vector<1x128xf32> to vector<8x128xf32>
    %30 = arith.addf %28, %29 : vector<8x128xf32>
    %31 = arith.truncf %30 : vector<8x128xf32> to vector<8x128xbf16>
    %c0_14 = arith.constant 0 : index
    %c0_15 = arith.constant 0 : index
    %32 = vector.load %arg6[%c0_14, %c0_15] : memref<128x256xbf16, #tpu.memory_space<vmem>>, vector<128x256xbf16>
    %cst_16 = arith.constant dense<0.000000e+00> : vector<8x256xf32>
    %33 = tpu.matmul %31, %32, %cst_16 {dimension_numbers = #tpu.dot_dimension_numbers<[1], [0], [0], [1], [0, 0, 1, 1], [], []>} : vector<8x128xbf16>, vector<128x256xbf16>, vector<8x256xf32> -> vector<8x256xf32>
    %c0_17 = arith.constant 0 : index
    %c0_18 = arith.constant 0 : index
    %34 = vector.load %arg7[%c0_17, %c0_18] : memref<1x256xf32, #tpu.memory_space<vmem>>, vector<1x256xf32>
    %35 = vector.broadcast %34 : vector<1x256xf32> to vector<8x256xf32>
    %36 = arith.addf %33, %35 : vector<8x256xf32>
    %cst_19 = arith.constant 5.000000e-01 : f32
    %37 = vector.broadcast %cst_19 : f32 to vector<8x256xf32>
    %38 = arith.mulf %37, %36 : vector<8x256xf32>
    %39 = arith.mulf %36, %36 : vector<8x256xf32>
    %40 = arith.mulf %36, %39 : vector<8x256xf32>
    %cst_20 = arith.constant 4.471500e-02 : f32
    %41 = vector.broadcast %cst_20 : f32 to vector<8x256xf32>
    %42 = arith.mulf %41, %40 : vector<8x256xf32>
    %43 = arith.addf %36, %42 : vector<8x256xf32>
    %cst_21 = arith.constant 0.797884583 : f32
    %44 = vector.broadcast %cst_21 : f32 to vector<8x256xf32>
    %45 = arith.mulf %44, %43 : vector<8x256xf32>
    %46 = math.tanh %45 : vector<8x256xf32>
    %cst_22 = arith.constant 1.000000e+00 : f32
    %47 = vector.broadcast %cst_22 : f32 to vector<8x256xf32>
    %48 = arith.addf %47, %46 : vector<8x256xf32>
    %49 = arith.mulf %38, %48 : vector<8x256xf32>
    %50 = arith.truncf %49 : vector<8x256xf32> to vector<8x256xbf16>
    %c0_23 = arith.constant 0 : index
    %c0_24 = arith.constant 0 : index
    %51 = vector.load %arg8[%c0_23, %c0_24] : memref<256x128xbf16, #tpu.memory_space<vmem>>, vector<256x128xbf16>
    %cst_25 = arith.constant dense<0.000000e+00> : vector<8x128xf32>
    %52 = tpu.matmul %50, %51, %cst_25 {dimension_numbers = #tpu.dot_dimension_numbers<[1], [0], [0], [1], [0, 0, 1, 1], [], []>} : vector<8x256xbf16>, vector<256x128xbf16>, vector<8x128xf32> -> vector<8x128xf32>
    %c0_26 = arith.constant 0 : index
    %c0_27 = arith.constant 0 : index
    %53 = vector.load %arg9[%c0_26, %c0_27] : memref<1x128xf32, #tpu.memory_space<vmem>>, vector<1x128xf32>
    %54 = vector.broadcast %53 : vector<1x128xf32> to vector<8x128xf32>
    %55 = arith.addf %52, %54 : vector<8x128xf32>
    %56 = arith.addf %55, %6 : vector<8x128xf32>
    %c0_28 = arith.constant 0 : index
    %c0_29 = arith.constant 0 : index
    %57 = vector.load %arg10[%c0_28, %c0_29] : memref<8x128xf32, #tpu.memory_space<vmem>>, vector<8x128xf32>
    tpu.vector_store %arg10[%c0_28, %c0_29], %56 {strides = array<i32>} : memref<8x128xf32, #tpu.memory_space<vmem>>, vector<8x128xf32>,
    return
  }
  func.func @transform_0(%arg0: i32) -> (i32, i32) {
    %c0_i32 = arith.constant 0 : i32
    %c0_i32_0 = arith.constant 0 : i32
    return %arg0, %c0_i32 : i32, i32
  }
  func.func @transform_1(%arg0: i32) -> (i32, i32) {
    %c0_i32 = arith.constant 0 : i32
    %c0_i32_0 = arith.constant 0 : i32
    %c0_i32_1 = arith.constant 0 : i32
    return %c0_i32, %c0_i32_0 : i32, i32
  }
  func.func @transform_2(%arg0: i32) -> (i32, i32) {
    %c0_i32 = arith.constant 0 : i32
    %c0_i32_0 = arith.constant 0 : i32
    %c0_i32_1 = arith.constant 0 : i32
    return %c0_i32, %c0_i32_0 : i32, i32
  }
  func.func @transform_3(%arg0: i32) -> (i32, i32) {
    %c0_i32 = arith.constant 0 : i32
    %c0_i32_0 = arith.constant 0 : i32
    %c0_i32_1 = arith.constant 0 : i32
    return %c0_i32, %c0_i32_0 : i32, i32
  }
  func.func @transform_4(%arg0: i32) -> (i32, i32) {
    %c0_i32 = arith.constant 0 : i32
    %c0_i32_0 = arith.constant 0 : i32
    %c0_i32_1 = arith.constant 0 : i32
    return %c0_i32, %c0_i32_0 : i32, i32
  }
  func.func @transform_5(%arg0: i32) -> (i32, i32) {
    %c0_i32 = arith.constant 0 : i32
    %c0_i32_0 = arith.constant 0 : i32
    %c0_i32_1 = arith.constant 0 : i32
    return %c0_i32, %c0_i32_0 : i32, i32
  }
  func.func @transform_6(%arg0: i32) -> (i32, i32) {
    %c0_i32 = arith.constant 0 : i32
    %c0_i32_0 = arith.constant 0 : i32
    %c0_i32_1 = arith.constant 0 : i32
    return %c0_i32, %c0_i32_0 : i32, i32
  }
  func.func @transform_7(%arg0: i32) -> (i32, i32) {
    %c0_i32 = arith.constant 0 : i32
    %c0_i32_0 = arith.constant 0 : i32
    %c0_i32_1 = arith.constant 0 : i32
    return %c0_i32, %c0_i32_0 : i32, i32
  }
  func.func @transform_8(%arg0: i32) -> (i32, i32) {
    %c0_i32 = arith.constant 0 : i32
    %c0_i32_0 = arith.constant 0 : i32
    %c0_i32_1 = arith.constant 0 : i32
    return %c0_i32, %c0_i32_0 : i32, i32
  }
  func.func @transform_9(%arg0: i32) -> (i32, i32) {
    %c0_i32 = arith.constant 0 : i32
    %c0_i32_0 = arith.constant 0 : i32
    return %arg0, %c0_i32 : i32, i32
  }
}

</mosaic_0001>

<llo_original>
// kernel: transformer_pooling_layer.3
$region0: #{transformer_pooling_layer.3}
  #allocation0 [shape = 'u32[]', space=smem, size = 0x4, offset = 0x4, fixed_abs, tag = 'smem constant byte address 0x4 - core index']
  #allocation1 [shape = 'u32[72,128]{1,0:T(1,128)}', space=vmem, size = 0x9000, scoped, tag = 'internal scratch']
  %s0 = inlined_call_operand.vmem [shape: f32[8,128], index: 0, kind: input, shape index: {}]
  %s1 = inlined_call_operand.vmem [shape: bf16[128,128], index: 1, kind: input, shape index: {}]
  %s2 = inlined_call_operand.vmem [shape: f32[1,128], index: 2, kind: input, shape index: {}]
  %s3 = inlined_call_operand.vmem [shape: f32[1,128], index: 3, kind: input, shape index: {}]
  %s4 = inlined_call_operand.vmem [shape: f32[1,128], index: 4, kind: input, shape index: {}]
  %s5 = inlined_call_operand.vmem [shape: bf16[128,256], index: 5, kind: input, shape index: {}]
  %s6 = inlined_call_operand.vmem [shape: f32[1,256], index: 6, kind: input, shape index: {}]
  %s7 = inlined_call_operand.vmem [shape: bf16[256,128], index: 7, kind: input, shape index: {}]
  %s8 = inlined_call_operand.vmem [shape: f32[1,128], index: 8, kind: input, shape index: {}]
  %s9 = inlined_call_operand.vmem [shape: f32[8,128], index: 9, kind: output, shape index: {}]
  %s10 = sld [smem:[#allocation0]]
  $region46: #{transformer_pooling_layer.3} parent=0
    _
  %s12 = ssub.s32 1, %s10
  %s13 = scalar_select 0, %s12, %s10
  // Predicated region
  $region2: #{transformer_pooling_layer.3} parent=0 // pred_check
    _
  $region3: #{transformer_pooling_layer.3} parent=0 // pred_check_branch
    %15 = sbr.rel (0) target = $region5
  $region4: #{transformer_pooling_layer.3} parent=0 // pred_region
    _
  $region5: #{transformer_pooling_layer.3} parent=0 // pred_fallthru
    _
  // Predicated region
  $region6: #{transformer_pooling_layer.3} parent=0 // pred_check
    _
  $region7: #{transformer_pooling_layer.3} parent=0 // pred_check_branch
    %17 = sbr.rel (0) target = $region9
  $region8: #{transformer_pooling_layer.3} parent=0 // pred_region
    _
  $region9: #{transformer_pooling_layer.3} parent=0 // pred_fallthru
    _
  // Predicated region
  $region10: #{transformer_pooling_layer.3} parent=0 // pred_check
    _
  $region11: #{transformer_pooling_layer.3} parent=0 // pred_check_branch
    %19 = sbr.rel (0) target = $region13
  $region12: #{transformer_pooling_layer.3} parent=0 // pred_region
    _
  $region13: #{transformer_pooling_layer.3} parent=0 // pred_fallthru
    _
  // Predicated region
  $region14: #{transformer_pooling_layer.3} parent=0 // pred_check
    _
  $region15: #{transformer_pooling_layer.3} parent=0 // pred_check_branch
    %21 = sbr.rel (0) target = $region17
  $region16: #{transformer_pooling_layer.3} parent=0 // pred_region
    _
  $region17: #{transformer_pooling_layer.3} parent=0 // pred_fallthru
    _
  // Predicated region
  $region18: #{transformer_pooling_layer.3} parent=0 // pred_check
    _
  $region19: #{transformer_pooling_layer.3} parent=0 // pred_check_branch
    %23 = sbr.rel (0) target = $region21
  $region20: #{transformer_pooling_layer.3} parent=0 // pred_region
    _
  $region21: #{transformer_pooling_layer.3} parent=0 // pred_fallthru
    _
  // Predicated region
  $region22: #{transformer_pooling_layer.3} parent=0 // pred_check
    _
  $region23: #{transformer_pooling_layer.3} parent=0 // pred_check_branch
    %25 = sbr.rel (0) target = $region25
  $region24: #{transformer_pooling_layer.3} parent=0 // pred_region
    _
  $region25: #{transformer_pooling_layer.3} parent=0 // pred_fallthru
    _
  // Predicated region
  $region26: #{transformer_pooling_layer.3} parent=0 // pred_check
    _
  $region27: #{transformer_pooling_layer.3} parent=0 // pred_check_branch
    %27 = sbr.rel (0) target = $region29
  $region28: #{transformer_pooling_layer.3} parent=0 // pred_region
    _
  $region29: #{transformer_pooling_layer.3} parent=0 // pred_fallthru
    _
  // Predicated region
  $region30: #{transformer_pooling_layer.3} parent=0 // pred_check
    _
  $region31: #{transformer_pooling_layer.3} parent=0 // pred_check_branch
    %29 = sbr.rel (0) target = $region33
  $region32: #{transformer_pooling_layer.3} parent=0 // pred_region
    _
  $region33: #{transformer_pooling_layer.3} parent=0 // pred_fallthru
    _
  // Predicated region
  $region34: #{transformer_pooling_layer.3} parent=0 // pred_check
    _
  $region35: #{transformer_pooling_layer.3} parent=0 // pred_check_branch
    %31 = sbr.rel (0) target = $region37
  $region36: #{transformer_pooling_layer.3} parent=0 // pred_region
    _
  $region37: #{transformer_pooling_layer.3} parent=0 // pred_fallthru
    _
  %v32 = vld [vmem:[%s0] sm:$0xff]
  %v33 = vpack.c.bf16 %v32, %v32
  %v34 = vld [vmem:[%s1] sm:$0xf]
  %v35 = vld [vmem:[%s1 + $0x4] sm:$0xf]
  %v36 = vld [vmem:[%s1 + $0x8] sm:$0xf]
  %v37 = vld [vmem:[%s1 + $0xc] sm:$0xf]
  %v38 = vld [vmem:[%s1 + $0x10] sm:$0xf]
  %v39 = vld [vmem:[%s1 + $0x14] sm:$0xf]
  %v40 = vld [vmem:[%s1 + $0x18] sm:$0xf]
  %v41 = vld [vmem:[%s1 + $0x1c] sm:$0xf]
  %v42 = vld [vmem:[%s1 + $0x20] sm:$0xf]
  %v43 = vld [vmem:[%s1 + $0x24] sm:$0xf]
  %v44 = vld [vmem:[%s1 + $0x28] sm:$0xf]
  %v45 = vld [vmem:[%s1 + $0x2c] sm:$0xf]
  %v46 = vld [vmem:[%s1 + $0x30] sm:$0xf]
  %v47 = vld [vmem:[%s1 + $0x34] sm:$0xf]
  %v48 = vld [vmem:[%s1 + $0x38] sm:$0xf]
  %v49 = vld [vmem:[%s1 + $0x3c] sm:$0xf]
  %v50 = vld [vmem:[%s2] sm:$0x1]
  %v52 = vperm.slane %v50, 0
  %v70 = vunpack.c.l.b16 %v34
  %v71 = vunpack.c.l.b16 %v35
  %v72 = vunpack.c.l.b16 %v36
  %v73 = vunpack.c.l.b16 %v37
  %v74 = vunpack.c.l.b16 %v38
  %v75 = vunpack.c.l.b16 %v39
  %v76 = vunpack.c.l.b16 %v40
  %v77 = vunpack.c.l.b16 %v41
  %v78 = vunpack.c.l.b16 %v42
  %v79 = vunpack.c.l.b16 %v43
  %v80 = vunpack.c.l.b16 %v44
  %v81 = vunpack.c.l.b16 %v45
  %v82 = vunpack.c.l.b16 %v46
  %v83 = vunpack.c.l.b16 %v47
  %v84 = vunpack.c.l.b16 %v48
  %v85 = vunpack.c.l.b16 %v49
  %v86 = vpack.c.b16 %v71, %v70
  %v87 = vpack.c.b16 %v73, %v72
  %v88 = vpack.c.b16 %v75, %v74
  %v89 = vpack.c.b16 %v77, %v76
  %v90 = vpack.c.b16 %v79, %v78
  %v91 = vpack.c.b16 %v81, %v80
  %v92 = vpack.c.b16 %v83, %v82
  %v93 = vpack.c.b16 %v85, %v84
  %102 = vmatpush.bf16.msra.mxu0 %v93
  %103 = vmatpush.bf16.msra.mxu0 %v92
  %104 = vmatpush.bf16.msra.mxu0 %v91
  %105 = vmatpush.bf16.msra.mxu0 %v90
  %106 = vmatpush.bf16.msra.mxu0 %v89
  %107 = vmatpush.bf16.msra.mxu0 %v88
  %108 = vmatpush.bf16.msra.mxu0 %v87
  %109 = vmatpush.bf16.msra.mxu0 %v86
  %110 = vmatmul.bf16.gmra.mxu0 %v33
  %v111 = vpop.f32.mrf.mxu0
  %v112 = vadd.f32 %v52, %v111
  %v113 = vpop.f32.mrf.mxu0
  %114 = vdwg.mxu0
  %v115 = vld [vmem:[%s3] sm:$0x1]
  %v116 = vld [vmem:[%s4] sm:$0x1]
  %117 = vadd.xlane.f32.xlu0 %v112
  %v118 = vpop.xlane.xlu0 %117
  %v119 = vrcp.pop 128.0
  %v120 = vmul.f32 128.0, %v119
  %v121 = vsub.f32 1.0, %v120
  %v122 = vmul.f32 %v119, %v121
  %v123 = vadd.f32 %v119, %v122
  %vm124 = vweird.f32 %v119
  %v125 = vsel %vm124, %v119, %v123
  %v126 = vmul.f32 %v118, %v125
  %v127 = vsub.f32 %v112, %v126
  %v128 = vmul.f32 %v127, %v127
  %129 = vadd.xlane.f32.xlu0 %v128
  %v130 = vpop.xlane.xlu0 %129
  %v131 = vmul.f32 %v130, %v125
  %v132 = vadd.f32 %v131, 1e-06
  %v133 = vrsqrt.pop %v132
  %v134 = vmul.f32 %v133, %v132
  %v135 = vmul.f32 %v134, %v133
  %v136 = vmul.f32 0.5, %v135
  %v137 = vsub.f32 1.5, %v136
  %v138 = vmul.f32 %v133, %v137
  %vm139 = vweird.f32 %v132
  %vm140 = vweird.f32 %v133
  %vm141 = vmor %vm139, %vm140
  %v142 = vsel %vm141, %v133, %v138
  %v143 = vmul.f32 %v127, %v142
  %v145 = vperm.slane %v115, 0
  %v147 = vmul.f32 %v143, %v145
  %v149 = vperm.slane %v116, 0
  %v151 = vadd.f32 %v147, %v149
  %v152 = vpack.c.bf16 %v151, %v151
  %v153 = vld [vmem:[%s5] sm:$0xff]
  %v154 = vld [vmem:[%s5 + $0x8] sm:$0xff]
  %v155 = vld [vmem:[%s5 + $0x10] sm:$0xff]
  %v156 = vld [vmem:[%s5 + $0x18] sm:$0xff]
  %v157 = vld [vmem:[%s5 + $0x20] sm:$0xff]
  %v158 = vld [vmem:[%s5 + $0x28] sm:$0xff]
  %v159 = vld [vmem:[%s5 + $0x30] sm:$0xff]
  %v160 = vld [vmem:[%s5 + $0x38] sm:$0xff]
  %v161 = vld [vmem:[%s5 + $0x40] sm:$0xff]
  %v162 = vld [vmem:[%s5 + $0x48] sm:$0xff]
  %v163 = vld [vmem:[%s5 + $0x50] sm:$0xff]
  %v164 = vld [vmem:[%s5 + $0x58] sm:$0xff]
  %v165 = vld [vmem:[%s5 + $0x60] sm:$0xff]
  %v166 = vld [vmem:[%s5 + $0x68] sm:$0xff]
  %v167 = vld [vmem:[%s5 + $0x70] sm:$0xff]
  %v168 = vld [vmem:[%s5 + $0x78] sm:$0xff]
  %v169 = vld [vmem:[%s6] sm:$0x3]
  %v171 = vperm.slane %v169, 0
  %v172 = vperm.slane %v169, 1
  %v191 = vunpack.c.l.b16 %v153
  %v192 = vunpack.c.h.b16 %v153
  %v193 = vunpack.c.l.b16 %v154
  %v194 = vunpack.c.h.b16 %v154
  %v195 = vunpack.c.l.b16 %v155
  %v196 = vunpack.c.h.b16 %v155
  %v197 = vunpack.c.l.b16 %v156
  %v198 = vunpack.c.h.b16 %v156
  %v199 = vunpack.c.l.b16 %v157
  %v200 = vunpack.c.h.b16 %v157
  %v201 = vunpack.c.l.b16 %v158
  %v202 = vunpack.c.h.b16 %v158
  %v203 = vunpack.c.l.b16 %v159
  %v204 = vunpack.c.h.b16 %v159
  %v205 = vunpack.c.l.b16 %v160
  %v206 = vunpack.c.h.b16 %v160
  %v207 = vunpack.c.l.b16 %v161
  %v208 = vunpack.c.h.b16 %v161
  %v209 = vunpack.c.l.b16 %v162
  %v210 = vunpack.c.h.b16 %v162
  %v211 = vunpack.c.l.b16 %v163
  %v212 = vunpack.c.h.b16 %v163
  %v213 = vunpack.c.l.b16 %v164
  %v214 = vunpack.c.h.b16 %v164
  %v215 = vunpack.c.l.b16 %v165
  %v216 = vunpack.c.h.b16 %v165
  %v217 = vunpack.c.l.b16 %v166
  %v218 = vunpack.c.h.b16 %v166
  %v219 = vunpack.c.l.b16 %v167
  %v220 = vunpack.c.h.b16 %v167
  %v221 = vunpack.c.l.b16 %v168
  %v222 = vunpack.c.h.b16 %v168
  %v223 = vpack.c.b16 %v193, %v191
  %v224 = vpack.c.b16 %v194, %v192
  %v225 = vpack.c.b16 %v197, %v195
  %v226 = vpack.c.b16 %v198, %v196
  %v227 = vpack.c.b16 %v201, %v199
  %v228 = vpack.c.b16 %v202, %v200
  %v229 = vpack.c.b16 %v205, %v203
  %v230 = vpack.c.b16 %v206, %v204
  %v231 = vpack.c.b16 %v209, %v207
  %v232 = vpack.c.b16 %v210, %v208
  %v233 = vpack.c.b16 %v213, %v211
  %v234 = vpack.c.b16 %v214, %v212
  %v235 = vpack.c.b16 %v217, %v215
  %v236 = vpack.c.b16 %v218, %v216
  %v237 = vpack.c.b16 %v221, %v219
  %v238 = vpack.c.b16 %v222, %v220
  %255 = vmatpush.bf16.msra.mxu0 %v237
  %256 = vmatpush.bf16.msra.mxu0 %v235
  %257 = vmatpush.bf16.msra.mxu0 %v233
  %258 = vmatpush.bf16.msra.mxu0 %v231
  %259 = vmatpush.bf16.msra.mxu0 %v229
  %260 = vmatpush.bf16.msra.mxu0 %v227
  %261 = vmatpush.bf16.msra.mxu0 %v225
  %262 = vmatpush.bf16.msra.mxu0 %v223
  %263 = vmatmul.bf16.gmra.mxu0 %v152
  %v264 = vpop.f32.mrf.mxu0
  %v265 = vadd.f32 %v171, %v264
  %v266 = vpop.f32.mrf.mxu0
  %267 = vdwg.mxu0
  %268 = vmatpush.bf16.msra.mxu0 %v238
  %269 = vmatpush.bf16.msra.mxu0 %v236
  %270 = vmatpush.bf16.msra.mxu0 %v234
  %271 = vmatpush.bf16.msra.mxu0 %v232
  %272 = vmatpush.bf16.msra.mxu0 %v230
  %273 = vmatpush.bf16.msra.mxu0 %v228
  %274 = vmatpush.bf16.msra.mxu0 %v226
  %275 = vmatpush.bf16.msra.mxu0 %v224
  %276 = vmatmul.bf16.gmra.mxu0 %v152
  %v277 = vpop.f32.mrf.mxu0
  %v278 = vadd.f32 %v172, %v277
  %v279 = vpop.f32.mrf.mxu0
  %280 = vdwg.mxu0
  %v281 = vmul.f32 %v265, 0.5
  %v282 = vmul.f32 %v278, 0.5
  %v283 = vmul.f32 %v265, %v265
  %v284 = vmul.f32 %v278, %v278
  %v285 = vmul.f32 %v265, %v283
  %v286 = vmul.f32 %v278, %v284
  %v287 = vmul.f32 %v285, 0.044715
  %v288 = vmul.f32 %v286, 0.044715
  %v289 = vadd.f32 %v265, %v287
  %v290 = vadd.f32 %v278, %v288
  %v291 = vmul.f32 %v289, 0.7978846
  %v292 = vmul.f32 %v290, 0.7978846
  %v293 = vtanh.pop %v291
  %v294 = vtanh.pop %v292
  %v295 = vadd.f32 %v293, 1.0
  %v296 = vadd.f32 %v294, 1.0
  %v297 = vmul.f32 %v281, %v295
  %v298 = vmul.f32 %v282, %v296
  %v299 = vpack.c.bf16 %v297, %v297
  %v300 = vpack.c.bf16 %v298, %v298
  %v301 = vld [vmem:[%s7] sm:$0xf]
  %v302 = vld [vmem:[%s7 + $0x4] sm:$0xf]
  %v303 = vld [vmem:[%s7 + $0x8] sm:$0xf]
  %v304 = vld [vmem:[%s7 + $0xc] sm:$0xf]
  %v305 = vld [vmem:[%s7 + $0x10] sm:$0xf]
  %v306 = vld [vmem:[%s7 + $0x14] sm:$0xf]
  %v307 = vld [vmem:[%s7 + $0x18] sm:$0xf]
  %v308 = vld [vmem:[%s7 + $0x1c] sm:$0xf]
  %v309 = vld [vmem:[%s7 + $0x20] sm:$0xf]
  %v310 = vld [vmem:[%s7 + $0x24] sm:$0xf]
  %v311 = vld [vmem:[%s7 + $0x28] sm:$0xf]
  %v312 = vld [vmem:[%s7 + $0x2c] sm:$0xf]
  %v313 = vld [vmem:[%s7 + $0x30] sm:$0xf]
  %v314 = vld [vmem:[%s7 + $0x34] sm:$0xf]
  %v315 = vld [vmem:[%s7 + $0x38] sm:$0xf]
  %v316 = vld [vmem:[%s7 + $0x3c] sm:$0xf]
  %v317 = vld [vmem:[%s7 + $0x40] sm:$0xf]
  %v318 = vld [vmem:[%s7 + $0x44] sm:$0xf]
  %v319 = vld [vmem:[%s7 + $0x48] sm:$0xf]
  %v320 = vld [vmem:[%s7 + $0x4c] sm:$0xf]
  %v321 = vld [vmem:[%s7 + $0x50] sm:$0xf]
  %v322 = vld [vmem:[%s7 + $0x54] sm:$0xf]
  %v323 = vld [vmem:[%s7 + $0x58] sm:$0xf]
  %v324 = vld [vmem:[%s7 + $0x5c] sm:$0xf]
  %v325 = vld [vmem:[%s7 + $0x60] sm:$0xf]
  %v326 = vld [vmem:[%s7 + $0x64] sm:$0xf]
  %v327 = vld [vmem:[%s7 + $0x68] sm:$0xf]
  %v328 = vld [vmem:[%s7 + $0x6c] sm:$0xf]
  %v329 = vld [vmem:[%s7 + $0x70] sm:$0xf]
  %v330 = vld [vmem:[%s7 + $0x74] sm:$0xf]
  %v331 = vld [vmem:[%s7 + $0x78] sm:$0xf]
  %v332 = vld [vmem:[%s7 + $0x7c] sm:$0xf]
  %v333 = vld [vmem:[%s8] sm:$0x1]
  %v335 = vperm.slane %v333, 0
  %v369 = vunpack.c.l.b16 %v301
  %v370 = vunpack.c.l.b16 %v302
  %v371 = vunpack.c.l.b16 %v303
  %v372 = vunpack.c.l.b16 %v304
  %v373 = vunpack.c.l.b16 %v305
  %v374 = vunpack.c.l.b16 %v306
  %v375 = vunpack.c.l.b16 %v307
  %v376 = vunpack.c.l.b16 %v308
  %v377 = vunpack.c.l.b16 %v309
  %v378 = vunpack.c.l.b16 %v310
  %v379 = vunpack.c.l.b16 %v311
  %v380 = vunpack.c.l.b16 %v312
  %v381 = vunpack.c.l.b16 %v313
  %v382 = vunpack.c.l.b16 %v314
  %v383 = vunpack.c.l.b16 %v315
  %v384 = vunpack.c.l.b16 %v316
  %v385 = vunpack.c.l.b16 %v317
  %v386 = vunpack.c.l.b16 %v318
  %v387 = vunpack.c.l.b16 %v319
  %v388 = vunpack.c.l.b16 %v320
  %v389 = vunpack.c.l.b16 %v321
  %v390 = vunpack.c.l.b16 %v322
  %v391 = vunpack.c.l.b16 %v323
  %v392 = vunpack.c.l.b16 %v324
  %v393 = vunpack.c.l.b16 %v325
  %v394 = vunpack.c.l.b16 %v326
  %v395 = vunpack.c.l.b16 %v327
  %v396 = vunpack.c.l.b16 %v328
  %v397 = vunpack.c.l.b16 %v329
  %v398 = vunpack.c.l.b16 %v330
  %v399 = vunpack.c.l.b16 %v331
  %v400 = vunpack.c.l.b16 %v332
  %v401 = vpack.c.b16 %v370, %v369
  %v402 = vpack.c.b16 %v372, %v371
  %v403 = vpack.c.b16 %v374, %v373
  %v404 = vpack.c.b16 %v376, %v375
  %v405 = vpack.c.b16 %v378, %v377
  %v406 = vpack.c.b16 %v380, %v379
  %v407 = vpack.c.b16 %v382, %v381
  %v408 = vpack.c.b16 %v384, %v383
  %v409 = vpack.c.b16 %v386, %v385
  %v410 = vpack.c.b16 %v388, %v387
  %v411 = vpack.c.b16 %v390, %v389
  %v412 = vpack.c.b16 %v392, %v391
  %v413 = vpack.c.b16 %v394, %v393
  %v414 = vpack.c.b16 %v396, %v395
  %v415 = vpack.c.b16 %v398, %v397
  %v416 = vpack.c.b16 %v400, %v399
  %433 = vmatpush.bf16.msra.mxu0 %v408
  %434 = vmatpush.bf16.msra.mxu0 %v407
  %435 = vmatpush.bf16.msra.mxu0 %v406
  %436 = vmatpush.bf16.msra.mxu0 %v405
  %437 = vmatpush.bf16.msra.mxu0 %v404
  %438 = vmatpush.bf16.msra.mxu0 %v403
  %439 = vmatpush.bf16.msra.mxu0 %v402
  %440 = vmatpush.bf16.msra.mxu0 %v401
  %441 = vmatmul.bf16.gmra.mxu0 %v299
  %v442 = vpop.f32.mrf.mxu0
  %v443 = vadd.f32 %v335, %v442
  %v444 = vpop.f32.mrf.mxu0
  %445 = vdwg.mxu0
  %446 = vmatpush.bf16.msra.mxu0 %v416
  %447 = vmatpush.bf16.msra.mxu0 %v415
  %448 = vmatpush.bf16.msra.mxu0 %v414
  %449 = vmatpush.bf16.msra.mxu0 %v413
  %450 = vmatpush.bf16.msra.mxu0 %v412
  %451 = vmatpush.bf16.msra.mxu0 %v411
  %452 = vmatpush.bf16.msra.mxu0 %v410
  %453 = vmatpush.bf16.msra.mxu0 %v409
  %454 = vmatmul.bf16.gmra.mxu0 %v300
  %v455 = vpop.f32.mrf.mxu0
  %v456 = vadd.f32 %v443, %v455
  %v457 = vpop.f32.mrf.mxu0
  %458 = vdwg.mxu0
  %v459 = vadd.f32 %v456, %v112
  %460 = vst [vmem:[%s9] sm:$0xff] %v459
  // Predicated region
  $region38: #{transformer_pooling_layer.3} parent=0 // pred_check
    _
  $region39: #{transformer_pooling_layer.3} parent=0 // pred_check_branch
    %462 = sbr.rel (0) target = $region41
  $region40: #{transformer_pooling_layer.3} parent=0 // pred_region
    _
  $region41: #{transformer_pooling_layer.3} parent=0 // pred_fallthru
    _
  // Predicated region
  $region42: #{transformer_pooling_layer.3} parent=0 // pred_check
    _
  $region43: #{transformer_pooling_layer.3} parent=0 // pred_check_branch
    %464 = sbr.rel (0) target = $region45
  $region44: #{transformer_pooling_layer.3} parent=0 // pred_region
    _
  $region45: #{transformer_pooling_layer.3} parent=0 // pred_fallthru
    _

// kernel: transformer_pooling_layer.2
$region0: #{transformer_pooling_layer.2}
  #allocation0 [shape = 'u32[]', space=smem, size = 0x4, offset = 0x4, fixed_abs, tag = 'smem constant byte address 0x4 - core index']
  #allocation1 [shape = 'u32[72,128]{1,0:T(1,128)}', space=vmem, size = 0x9000, scoped, tag = 'internal scratch']
  %s0 = inlined_call_operand.vmem [shape: bf16[8,16,128], index: 0, kind: input, shape index: {}]
  %s1 = inlined_call_operand.vmem [shape: f32[8,16,1], index: 1, kind: input, shape index: {}]
  %s2 = inlined_call_operand.vmem [shape: f32[1,128], index: 2, kind: input, shape index: {}]
  %s3 = inlined_call_operand.vmem [shape: f32[1,128], index: 3, kind: input, shape index: {}]
  %s4 = inlined_call_operand.vmem [shape: bf16[128,132], index: 4, kind: input, shape index: {}]
  %s5 = inlined_call_operand.vmem [shape: f32[1,132], index: 5, kind: input, shape index: {}]
  %s6 = inlined_call_operand.vmem [shape: bf16[4,128], index: 6, kind: input, shape index: {}]
  %s7 = inlined_call_operand.vmem [shape: f32[8,128], index: 7, kind: output, shape index: {}]
  %s8 = sld [smem:[#allocation0]]
  $region38: #{transformer_pooling_layer.2} parent=0
    _
  %s10 = ssub.s32 1, %s8
  %s11 = scalar_select 0, %s10, %s8
  // Predicated region
  $region2: #{transformer_pooling_layer.2} parent=0 // pred_check
    _
  $region3: #{transformer_pooling_layer.2} parent=0 // pred_check_branch
    %13 = sbr.rel (0) target = $region5
  $region4: #{transformer_pooling_layer.2} parent=0 // pred_region
    _
  $region5: #{transformer_pooling_layer.2} parent=0 // pred_fallthru
    _
  // Predicated region
  $region6: #{transformer_pooling_layer.2} parent=0 // pred_check
    _
  $region7: #{transformer_pooling_layer.2} parent=0 // pred_check_branch
    %15 = sbr.rel (0) target = $region9
  $region8: #{transformer_pooling_layer.2} parent=0 // pred_region
    _
  $region9: #{transformer_pooling_layer.2} parent=0 // pred_fallthru
    _
  // Predicated region
  $region10: #{transformer_pooling_layer.2} parent=0 // pred_check
    _
  $region11: #{transformer_pooling_layer.2} parent=0 // pred_check_branch
    %17 = sbr.rel (0) target = $region13
  $region12: #{transformer_pooling_layer.2} parent=0 // pred_region
    _
  $region13: #{transformer_pooling_layer.2} parent=0 // pred_fallthru
    _
  // Predicated region
  $region14: #{transformer_pooling_layer.2} parent=0 // pred_check
    _
  $region15: #{transformer_pooling_layer.2} parent=0 // pred_check_branch
    %19 = sbr.rel (0) target = $region17
  $region16: #{transformer_pooling_layer.2} parent=0 // pred_region
    _
  $region17: #{transformer_pooling_layer.2} parent=0 // pred_fallthru
    _
  // Predicated region
  $region18: #{transformer_pooling_layer.2} parent=0 // pred_check
    _
  $region19: #{transformer_pooling_layer.2} parent=0 // pred_check_branch
    %21 = sbr.rel (0) target = $region21
  $region20: #{transformer_pooling_layer.2} parent=0 // pred_region
    _
  $region21: #{transformer_pooling_layer.2} parent=0 // pred_fallthru
    _
  // Predicated region
  $region22: #{transformer_pooling_layer.2} parent=0 // pred_check
    _
  $region23: #{transformer_pooling_layer.2} parent=0 // pred_check_branch
    %23 = sbr.rel (0) target = $region25
  $region24: #{transformer_pooling_layer.2} parent=0 // pred_region
    _
  $region25: #{transformer_pooling_layer.2} parent=0 // pred_fallthru
    _
  // Predicated region
  $region26: #{transformer_pooling_layer.2} parent=0 // pred_check
    _
  $region27: #{transformer_pooling_layer.2} parent=0 // pred_check_branch
    %25 = sbr.rel (0) target = $region29
  $region28: #{transformer_pooling_layer.2} parent=0 // pred_region
    _
  $region29: #{transformer_pooling_layer.2} parent=0 // pred_fallthru
    _
  %v27 = vld [vmem:[%s0] sm:$0xf]
  %v28 = vld [vmem:[%s0 + $0x4] sm:$0xf]
  %v29 = vld [vmem:[%s0 + $0x8] sm:$0xf]
  %v30 = vld [vmem:[%s0 + $0xc] sm:$0xf]
  %v31 = vld [vmem:[%s0 + $0x10] sm:$0xf]
  %v32 = vld [vmem:[%s0 + $0x14] sm:$0xf]
  %v33 = vld [vmem:[%s0 + $0x18] sm:$0xf]
  %v34 = vld [vmem:[%s0 + $0x1c] sm:$0xf]
  %v35 = vld [vmem:[%s0 + $0x20] sm:$0xf]
  %v36 = vld [vmem:[%s0 + $0x24] sm:$0xf]
  %v37 = vld [vmem:[%s0 + $0x28] sm:$0xf]
  %v38 = vld [vmem:[%s0 + $0x2c] sm:$0xf]
  %v39 = vld [vmem:[%s0 + $0x30] sm:$0xf]
  %v40 = vld [vmem:[%s0 + $0x34] sm:$0xf]
  %v41 = vld [vmem:[%s0 + $0x38] sm:$0xf]
  %v42 = vld [vmem:[%s0 + $0x3c] sm:$0xf]
  %v43 = vunpack.c.l.bf16 %v27
  %v44 = vunpack.c.l.bf16 %v28
  %v45 = vunpack.c.l.bf16 %v29
  %v46 = vunpack.c.l.bf16 %v30
  %v47 = vunpack.c.l.bf16 %v31
  %v48 = vunpack.c.l.bf16 %v32
  %v49 = vunpack.c.l.bf16 %v33
  %v50 = vunpack.c.l.bf16 %v34
  %v51 = vunpack.c.l.bf16 %v35
  %v52 = vunpack.c.l.bf16 %v36
  %v53 = vunpack.c.l.bf16 %v37
  %v54 = vunpack.c.l.bf16 %v38
  %v55 = vunpack.c.l.bf16 %v39
  %v56 = vunpack.c.l.bf16 %v40
  %v57 = vunpack.c.l.bf16 %v41
  %v58 = vunpack.c.l.bf16 %v42
  %v59 = vld [vmem:[%s2] sm:$0x1]
  %v60 = vld [vmem:[%s3] sm:$0x1]
  %61 = vadd.xlane.f32.xlu0 %v43
  %v62 = vpop.xlane.xlu0 %61
  %63 = vadd.xlane.f32.xlu0 %v44
  %v64 = vpop.xlane.xlu0 %63
  %65 = vadd.xlane.f32.xlu0 %v45
  %v66 = vpop.xlane.xlu0 %65
  %67 = vadd.xlane.f32.xlu0 %v46
  %v68 = vpop.xlane.xlu0 %67
  %69 = vadd.xlane.f32.xlu0 %v47
  %v70 = vpop.xlane.xlu0 %69
  %71 = vadd.xlane.f32.xlu0 %v48
  %v72 = vpop.xlane.xlu0 %71
  %73 = vadd.xlane.f32.xlu0 %v49
  %v74 = vpop.xlane.xlu0 %73
  %75 = vadd.xlane.f32.xlu0 %v50
  %v76 = vpop.xlane.xlu0 %75
  %77 = vadd.xlane.f32.xlu0 %v51
  %v78 = vpop.xlane.xlu0 %77
  %79 = vadd.xlane.f32.xlu0 %v52
  %v80 = vpop.xlane.xlu0 %79
  %81 = vadd.xlane.f32.xlu0 %v53
  %v82 = vpop.xlane.xlu0 %81
  %83 = vadd.xlane.f32.xlu0 %v54
  %v84 = vpop.xlane.xlu0 %83
  %85 = vadd.xlane.f32.xlu0 %v55
  %v86 = vpop.xlane.xlu0 %85
  %87 = vadd.xlane.f32.xlu0 %v56
  %v88 = vpop.xlane.xlu0 %87
  %89 = vadd.xlane.f32.xlu0 %v57
  %v90 = vpop.xlane.xlu0 %89
  %91 = vadd.xlane.f32.xlu0 %v58
  %v92 = vpop.xlane.xlu0 %91
  %v93 = vrcp.pop 128.0
  %v94 = vmul.f32 128.0, %v93
  %v95 = vsub.f32 1.0, %v94
  %v96 = vmul.f32 %v93, %v95
  %v97 = vadd.f32 %v93, %v96
  %vm98 = vweird.f32 %v93
  %v99 = vsel %vm98, %v93, %v97
  %v100 = vmul.f32 %v62, %v99
  %v101 = vmul.f32 %v64, %v99
  %v102 = vmul.f32 %v66, %v99
  %v103 = vmul.f32 %v68, %v99
  %v104 = vmul.f32 %v70, %v99
  %v105 = vmul.f32 %v72, %v99
  %v106 = vmul.f32 %v74, %v99
  %v107 = vmul.f32 %v76, %v99
  %v108 = vmul.f32 %v78, %v99
  %v109 = vmul.f32 %v80, %v99
  %v110 = vmul.f32 %v82, %v99
  %v111 = vmul.f32 %v84, %v99
  %v112 = vmul.f32 %v86, %v99
  %v113 = vmul.f32 %v88, %v99
  %v114 = vmul.f32 %v90, %v99
  %v115 = vmul.f32 %v92, %v99
  %v116 = vsub.f32 %v43, %v100
  %v117 = vsub.f32 %v44, %v101
  %v118 = vsub.f32 %v45, %v102
  %v119 = vsub.f32 %v46, %v103
  %v120 = vsub.f32 %v47, %v104
  %v121 = vsub.f32 %v48, %v105
  %v122 = vsub.f32 %v49, %v106
  %v123 = vsub.f32 %v50, %v107
  %v124 = vsub.f32 %v51, %v108
  %v125 = vsub.f32 %v52, %v109
  %v126 = vsub.f32 %v53, %v110
  %v127 = vsub.f32 %v54, %v111
  %v128 = vsub.f32 %v55, %v112
  %v129 = vsub.f32 %v56, %v113
  %v130 = vsub.f32 %v57, %v114
  %v131 = vsub.f32 %v58, %v115
  %v132 = vmul.f32 %v116, %v116
  %v133 = vmul.f32 %v117, %v117
  %v134 = vmul.f32 %v118, %v118
  %v135 = vmul.f32 %v119, %v119
  %v136 = vmul.f32 %v120, %v120
  %v137 = vmul.f32 %v121, %v121
  %v138 = vmul.f32 %v122, %v122
  %v139 = vmul.f32 %v123, %v123
  %v140 = vmul.f32 %v124, %v124
  %v141 = vmul.f32 %v125, %v125
  %v142 = vmul.f32 %v126, %v126
  %v143 = vmul.f32 %v127, %v127
  %v144 = vmul.f32 %v128, %v128
  %v145 = vmul.f32 %v129, %v129
  %v146 = vmul.f32 %v130, %v130
  %v147 = vmul.f32 %v131, %v131
  %148 = vadd.xlane.f32.xlu0 %v132
  %v149 = vpop.xlane.xlu0 %148
  %150 = vadd.xlane.f32.xlu0 %v133
  %v151 = vpop.xlane.xlu0 %150
  %152 = vadd.xlane.f32.xlu0 %v134
  %v153 = vpop.xlane.xlu0 %152
  %154 = vadd.xlane.f32.xlu0 %v135
  %v155 = vpop.xlane.xlu0 %154
  %156 = vadd.xlane.f32.xlu0 %v136
  %v157 = vpop.xlane.xlu0 %156
  %158 = vadd.xlane.f32.xlu0 %v137
  %v159 = vpop.xlane.xlu0 %158
  %160 = vadd.xlane.f32.xlu0 %v138
  %v161 = vpop.xlane.xlu0 %160
  %162 = vadd.xlane.f32.xlu0 %v139
  %v163 = vpop.xlane.xlu0 %162
  %164 = vadd.xlane.f32.xlu0 %v140
  %v165 = vpop.xlane.xlu0 %164
  %166 = vadd.xlane.f32.xlu0 %v141
  %v167 = vpop.xlane.xlu0 %166
  %168 = vadd.xlane.f32.xlu0 %v142
  %v169 = vpop.xlane.xlu0 %168
  %170 = vadd.xlane.f32.xlu0 %v143
  %v171 = vpop.xlane.xlu0 %170
  %172 = vadd.xlane.f32.xlu0 %v144
  %v173 = vpop.xlane.xlu0 %172
  %174 = vadd.xlane.f32.xlu0 %v145
  %v175 = vpop.xlane.xlu0 %174
  %176 = vadd.xlane.f32.xlu0 %v146
  %v177 = vpop.xlane.xlu0 %176
  %178 = vadd.xlane.f32.xlu0 %v147
  %v179 = vpop.xlane.xlu0 %178
  %v180 = vmul.f32 %v149, %v99
  %v181 = vmul.f32 %v151, %v99
  %v182 = vmul.f32 %v153, %v99
  %v183 = vmul.f32 %v155, %v99
  %v184 = vmul.f32 %v157, %v99
  %v185 = vmul.f32 %v159, %v99
  %v186 = vmul.f32 %v161, %v99
  %v187 = vmul.f32 %v163, %v99
  %v188 = vmul.f32 %v165, %v99
  %v189 = vmul.f32 %v167, %v99
  %v190 = vmul.f32 %v169, %v99
  %v191 = vmul.f32 %v171, %v99
  %v192 = vmul.f32 %v173, %v99
  %v193 = vmul.f32 %v175, %v99
  %v194 = vmul.f32 %v177, %v99
  %v195 = vmul.f32 %v179, %v99
  %v196 = vadd.f32 %v180, 1e-06
  %v197 = vadd.f32 %v181, 1e-06
  %v198 = vadd.f32 %v182, 1e-06
  %v199 = vadd.f32 %v183, 1e-06
  %v200 = vadd.f32 %v184, 1e-06
  %v201 = vadd.f32 %v185, 1e-06
  %v202 = vadd.f32 %v186, 1e-06
  %v203 = vadd.f32 %v187, 1e-06
  %v204 = vadd.f32 %v188, 1e-06
  %v205 = vadd.f32 %v189, 1e-06
  %v206 = vadd.f32 %v190, 1e-06
  %v207 = vadd.f32 %v191, 1e-06
  %v208 = vadd.f32 %v192, 1e-06
  %v209 = vadd.f32 %v193, 1e-06
  %v210 = vadd.f32 %v194, 1e-06
  %v211 = vadd.f32 %v195, 1e-06
  %v212 = vrsqrt.pop %v196
  %v213 = vmul.f32 %v212, %v196
  %v214 = vmul.f32 %v213, %v212
  %v215 = vmul.f32 0.5, %v214
  %v216 = vsub.f32 1.5, %v215
  %v217 = vmul.f32 %v212, %v216
  %vm218 = vweird.f32 %v196
  %vm219 = vweird.f32 %v212
  %vm220 = vmor %vm218, %vm219
  %v221 = vsel %vm220, %v212, %v217
  %v222 = vrsqrt.pop %v197
  %v223 = vmul.f32 %v222, %v197
  %v224 = vmul.f32 %v223, %v222
  %v225 = vmul.f32 0.5, %v224
  %v226 = vsub.f32 1.5, %v225
  %v227 = vmul.f32 %v222, %v226
  %vm228 = vweird.f32 %v197
  %vm229 = vweird.f32 %v222
  %vm230 = vmor %vm228, %vm229
  %v231 = vsel %vm230, %v222, %v227
  %v232 = vrsqrt.pop %v198
  %v233 = vmul.f32 %v232, %v198
  %v234 = vmul.f32 %v233, %v232
  %v235 = vmul.f32 0.5, %v234
  %v236 = vsub.f32 1.5, %v235
  %v237 = vmul.f32 %v232, %v236
  %vm238 = vweird.f32 %v198
  %vm239 = vweird.f32 %v232
  %vm240 = vmor %vm238, %vm239
  %v241 = vsel %vm240, %v232, %v237
  %v242 = vrsqrt.pop %v199
  %v243 = vmul.f32 %v242, %v199
  %v244 = vmul.f32 %v243, %v242
  %v245 = vmul.f32 0.5, %v244
  %v246 = vsub.f32 1.5, %v245
  %v247 = vmul.f32 %v242, %v246
  %vm248 = vweird.f32 %v199
  %vm249 = vweird.f32 %v242
  %vm250 = vmor %vm248, %vm249
  %v251 = vsel %vm250, %v242, %v247
  %v252 = vrsqrt.pop %v200
  %v253 = vmul.f32 %v252, %v200
  %v254 = vmul.f32 %v253, %v252
  %v255 = vmul.f32 0.5, %v254
  %v256 = vsub.f32 1.5, %v255
  %v257 = vmul.f32 %v252, %v256
  %vm258 = vweird.f32 %v200
  %vm259 = vweird.f32 %v252
  %vm260 = vmor %vm258, %vm259
  %v261 = vsel %vm260, %v252, %v257
  %v262 = vrsqrt.pop %v201
  %v263 = vmul.f32 %v262, %v201
  %v264 = vmul.f32 %v263, %v262
  %v265 = vmul.f32 0.5, %v264
  %v266 = vsub.f32 1.5, %v265
  %v267 = vmul.f32 %v262, %v266
  %vm268 = vweird.f32 %v201
  %vm269 = vweird.f32 %v262
  %vm270 = vmor %vm268, %vm269
  %v271 = vsel %vm270, %v262, %v267
  %v272 = vrsqrt.pop %v202
  %v273 = vmul.f32 %v272, %v202
  %v274 = vmul.f32 %v273, %v272
  %v275 = vmul.f32 0.5, %v274
  %v276 = vsub.f32 1.5, %v275
  %v277 = vmul.f32 %v272, %v276
  %vm278 = vweird.f32 %v202
  %vm279 = vweird.f32 %v272
  %vm280 = vmor %vm278, %vm279
  %v281 = vsel %vm280, %v272, %v277
  %v282 = vrsqrt.pop %v203
  %v283 = vmul.f32 %v282, %v203
  %v284 = vmul.f32 %v283, %v282
  %v285 = vmul.f32 0.5, %v284
  %v286 = vsub.f32 1.5, %v285
  %v287 = vmul.f32 %v282, %v286
  %vm288 = vweird.f32 %v203
  %vm289 = vweird.f32 %v282
  %vm290 = vmor %vm288, %vm289
  %v291 = vsel %vm290, %v282, %v287
  %v292 = vrsqrt.pop %v204
  %v293 = vmul.f32 %v292, %v204
  %v294 = vmul.f32 %v293, %v292
  %v295 = vmul.f32 0.5, %v294
  %v296 = vsub.f32 1.5, %v295
  %v297 = vmul.f32 %v292, %v296
  %vm298 = vweird.f32 %v204
  %vm299 = vweird.f32 %v292
  %vm300 = vmor %vm298, %vm299
  %v301 = vsel %vm300, %v292, %v297
  %v302 = vrsqrt.pop %v205
  %v303 = vmul.f32 %v302, %v205
  %v304 = vmul.f32 %v303, %v302
  %v305 = vmul.f32 0.5, %v304
  %v306 = vsub.f32 1.5, %v305
  %v307 = vmul.f32 %v302, %v306
  %vm308 = vweird.f32 %v205
  %vm309 = vweird.f32 %v302
  %vm310 = vmor %vm308, %vm309
  %v311 = vsel %vm310, %v302, %v307
  %v312 = vrsqrt.pop %v206
  %v313 = vmul.f32 %v312, %v206
  %v314 = vmul.f32 %v313, %v312
  %v315 = vmul.f32 0.5, %v314
  %v316 = vsub.f32 1.5, %v315
  %v317 = vmul.f32 %v312, %v316
  %vm318 = vweird.f32 %v206
  %vm319 = vweird.f32 %v312
  %vm320 = vmor %vm318, %vm319
  %v321 = vsel %vm320, %v312, %v317
  %v322 = vrsqrt.pop %v207
  %v323 = vmul.f32 %v322, %v207
  %v324 = vmul.f32 %v323, %v322
  %v325 = vmul.f32 0.5, %v324
  %v326 = vsub.f32 1.5, %v325
  %v327 = vmul.f32 %v322, %v326
  %vm328 = vweird.f32 %v207
  %vm329 = vweird.f32 %v322
  %vm330 = vmor %vm328, %vm329
  %v331 = vsel %vm330, %v322, %v327
  %v332 = vrsqrt.pop %v208
  %v333 = vmul.f32 %v332, %v208
  %v334 = vmul.f32 %v333, %v332
  %v335 = vmul.f32 0.5, %v334
  %v336 = vsub.f32 1.5, %v335
  %v337 = vmul.f32 %v332, %v336
  %vm338 = vweird.f32 %v208
  %vm339 = vweird.f32 %v332
  %vm340 = vmor %vm338, %vm339
  %v341 = vsel %vm340, %v332, %v337
  %v342 = vrsqrt.pop %v209
  %v343 = vmul.f32 %v342, %v209
  %v344 = vmul.f32 %v343, %v342
  %v345 = vmul.f32 0.5, %v344
  %v346 = vsub.f32 1.5, %v345
  %v347 = vmul.f32 %v342, %v346
  %vm348 = vweird.f32 %v209
  %vm349 = vweird.f32 %v342
  %vm350 = vmor %vm348, %vm349
  %v351 = vsel %vm350, %v342, %v347
  %v352 = vrsqrt.pop %v210
  %v353 = vmul.f32 %v352, %v210
  %v354 = vmul.f32 %v353, %v352
  %v355 = vmul.f32 0.5, %v354
  %v356 = vsub.f32 1.5, %v355
  %v357 = vmul.f32 %v352, %v356
  %vm358 = vweird.f32 %v210
  %vm359 = vweird.f32 %v352
  %vm360 = vmor %vm358, %vm359
  %v361 = vsel %vm360, %v352, %v357
  %v362 = vrsqrt.pop %v211
  %v363 = vmul.f32 %v362, %v211
  %v364 = vmul.f32 %v363, %v362
  %v365 = vmul.f32 0.5, %v364
  %v366 = vsub.f32 1.5, %v365
  %v367 = vmul.f32 %v362, %v366
  %vm368 = vweird.f32 %v211
  %vm369 = vweird.f32 %v362
  %vm370 = vmor %vm368, %vm369
  %v371 = vsel %vm370, %v362, %v367
  %v372 = vmul.f32 %v116, %v221
  %v373 = vmul.f32 %v117, %v231
  %v374 = vmul.f32 %v118, %v241
  %v375 = vmul.f32 %v119, %v251
  %v376 = vmul.f32 %v120, %v261
  %v377 = vmul.f32 %v121, %v271
  %v378 = vmul.f32 %v122, %v281
  %v379 = vmul.f32 %v123, %v291
  %v380 = vmul.f32 %v124, %v301
  %v381 = vmul.f32 %v125, %v311
  %v382 = vmul.f32 %v126, %v321
  %v383 = vmul.f32 %v127, %v331
  %v384 = vmul.f32 %v128, %v341
  %v385 = vmul.f32 %v129, %v351
  %v386 = vmul.f32 %v130, %v361
  %v387 = vmul.f32 %v131, %v371
  %v389 = vperm.slane %v59, 0
  %v391 = vmul.f32 %v372, %v389
  %v392 = vmul.f32 %v373, %v389
  %v393 = vmul.f32 %v374, %v389
  %v394 = vmul.f32 %v375, %v389
  %v395 = vmul.f32 %v376, %v389
  %v396 = vmul.f32 %v377, %v389
  %v397 = vmul.f32 %v378, %v389
  %v398 = vmul.f32 %v379, %v389
  %v399 = vmul.f32 %v380, %v389
  %v400 = vmul.f32 %v381, %v389
  %v401 = vmul.f32 %v382, %v389
  %v402 = vmul.f32 %v383, %v389
  %v403 = vmul.f32 %v384, %v389
  %v404 = vmul.f32 %v385, %v389
  %v405 = vmul.f32 %v386, %v389
  %v406 = vmul.f32 %v387, %v389
  %v408 = vperm.slane %v60, 0
  %v410 = vadd.f32 %v391, %v408
  %v411 = vadd.f32 %v392, %v408
  %v412 = vadd.f32 %v393, %v408
  %v413 = vadd.f32 %v394, %v408
  %v414 = vadd.f32 %v395, %v408
  %v415 = vadd.f32 %v396, %v408
  %v416 = vadd.f32 %v397, %v408
  %v417 = vadd.f32 %v398, %v408
  %v418 = vadd.f32 %v399, %v408
  %v419 = vadd.f32 %v400, %v408
  %v420 = vadd.f32 %v401, %v408
  %v421 = vadd.f32 %v402, %v408
  %v422 = vadd.f32 %v403, %v408
  %v423 = vadd.f32 %v404, %v408
  %v424 = vadd.f32 %v405, %v408
  %v425 = vadd.f32 %v406, %v408
  %v426 = vpack.c.bf16 %v411, %v410
  %v427 = vpack.c.bf16 %v413, %v412
  %v428 = vpack.c.bf16 %v415, %v414
  %v429 = vpack.c.bf16 %v417, %v416
  %v430 = vpack.c.bf16 %v419, %v418
  %v431 = vpack.c.bf16 %v421, %v420
  %v432 = vpack.c.bf16 %v423, %v422
  %v433 = vpack.c.bf16 %v425, %v424
  %v434 = vld [vmem:[%s4] sm:$0xff]
  %v435 = vld [vmem:[%s4 + $0x8] sm:$0xff]
  %v436 = vld [vmem:[%s4 + $0x10] sm:$0xff]
  %v437 = vld [vmem:[%s4 + $0x18] sm:$0xff]
  %v438 = vld [vmem:[%s4 + $0x20] sm:$0xff]
  %v439 = vld [vmem:[%s4 + $0x28] sm:$0xff]
  %v440 = vld [vmem:[%s4 + $0x30] sm:$0xff]
  %v441 = vld [vmem:[%s4 + $0x38] sm:$0xff]
  %v442 = vld [vmem:[%s4 + $0x40] sm:$0xff]
  %v443 = vld [vmem:[%s4 + $0x48] sm:$0xff]
  %v444 = vld [vmem:[%s4 + $0x50] sm:$0xff]
  %v445 = vld [vmem:[%s4 + $0x58] sm:$0xff]
  %v446 = vld [vmem:[%s4 + $0x60] sm:$0xff]
  %v447 = vld [vmem:[%s4 + $0x68] sm:$0xff]
  %v448 = vld [vmem:[%s4 + $0x70] sm:$0xff]
  %v449 = vld [vmem:[%s4 + $0x78] sm:$0xff]
  %v450 = vld [vmem:[%s5] sm:$0x3]
  %v452 = vperm.slane %v450, 0
  %v453 = vperm.slane %v450, 1
  %v472 = vunpack.c.l.b16 %v434
  %v473 = vunpack.c.h.b16 %v434
  %v474 = vunpack.c.l.b16 %v435
  %v475 = vunpack.c.h.b16 %v435
  %v476 = vunpack.c.l.b16 %v436
  %v477 = vunpack.c.h.b16 %v436
  %v478 = vunpack.c.l.b16 %v437
  %v479 = vunpack.c.h.b16 %v437
  %v480 = vunpack.c.l.b16 %v438
  %v481 = vunpack.c.h.b16 %v438
  %v482 = vunpack.c.l.b16 %v439
  %v483 = vunpack.c.h.b16 %v439
  %v484 = vunpack.c.l.b16 %v440
  %v485 = vunpack.c.h.b16 %v440
  %v486 = vunpack.c.l.b16 %v441
  %v487 = vunpack.c.h.b16 %v441
  %v488 = vunpack.c.l.b16 %v442
  %v489 = vunpack.c.h.b16 %v442
  %v490 = vunpack.c.l.b16 %v443
  %v491 = vunpack.c.h.b16 %v443
  %v492 = vunpack.c.l.b16 %v444
  %v493 = vunpack.c.h.b16 %v444
  %v494 = vunpack.c.l.b16 %v445
  %v495 = vunpack.c.h.b16 %v445
  %v496 = vunpack.c.l.b16 %v446
  %v497 = vunpack.c.h.b16 %v446
  %v498 = vunpack.c.l.b16 %v447
  %v499 = vunpack.c.h.b16 %v447
  %v500 = vunpack.c.l.b16 %v448
  %v501 = vunpack.c.h.b16 %v448
  %v502 = vunpack.c.l.b16 %v449
  %v503 = vunpack.c.h.b16 %v449
  %v504 = vpack.c.b16 %v474, %v472
  %v505 = vpack.c.b16 %v475, %v473
  %v506 = vpack.c.b16 %v478, %v476
  %v507 = vpack.c.b16 %v479, %v477
  %v508 = vpack.c.b16 %v482, %v480
  %v509 = vpack.c.b16 %v483, %v481
  %v510 = vpack.c.b16 %v486, %v484
  %v511 = vpack.c.b16 %v487, %v485
  %v512 = vpack.c.b16 %v490, %v488
  %v513 = vpack.c.b16 %v491, %v489
  %v514 = vpack.c.b16 %v494, %v492
  %v515 = vpack.c.b16 %v495, %v493
  %v516 = vpack.c.b16 %v498, %v496
  %v517 = vpack.c.b16 %v499, %v497
  %v518 = vpack.c.b16 %v502, %v500
  %v519 = vpack.c.b16 %v503, %v501
  %536 = vmatpush.bf16.msra.mxu0 %v518
  %537 = vmatpush.bf16.msra.mxu0 %v516
  %538 = vmatpush.bf16.msra.mxu0 %v514
  %539 = vmatpush.bf16.msra.mxu0 %v512
  %540 = vmatpush.bf16.msra.mxu0 %v510
  %541 = vmatpush.bf16.msra.mxu0 %v508
  %542 = vmatpush.bf16.msra.mxu0 %v506
  %543 = vmatpush.bf16.msra.mxu0 %v504
  %544 = vmatmul.bf16.gmra.mxu0 %v426
  %v545 = vpop.f32.mrf.mxu0
  %v546 = vadd.f32 %v452, %v545
  %v547 = vpop.f32.mrf.mxu0
  %v548 = vadd.f32 %v452, %v547
  %549 = vmatmul.bf16.gmra.mxu0 %v427
  %v550 = vpop.f32.mrf.mxu0
  %v551 = vadd.f32 %v452, %v550
  %v552 = vpop.f32.mrf.mxu0
  %v553 = vadd.f32 %v452, %v552
  %554 = vmatmul.bf16.gmra.mxu0 %v428
  %v555 = vpop.f32.mrf.mxu0
  %v556 = vadd.f32 %v452, %v555
  %v557 = vpop.f32.mrf.mxu0
  %v558 = vadd.f32 %v452, %v557
  %559 = vmatmul.bf16.gmra.mxu0 %v429
  %v560 = vpop.f32.mrf.mxu0
  %v561 = vadd.f32 %v452, %v560
  %v562 = vpop.f32.mrf.mxu0
  %v563 = vadd.f32 %v452, %v562
  %564 = vmatmul.bf16.gmra.mxu0 %v430
  %v565 = vpop.f32.mrf.mxu0
  %v566 = vadd.f32 %v452, %v565
  %v567 = vpop.f32.mrf.mxu0
  %v568 = vadd.f32 %v452, %v567
  %569 = vmatmul.bf16.gmra.mxu0 %v431
  %v570 = vpop.f32.mrf.mxu0
  %v571 = vadd.f32 %v452, %v570
  %v572 = vpop.f32.mrf.mxu0
  %v573 = vadd.f32 %v452, %v572
  %574 = vmatmul.bf16.gmra.mxu0 %v432
  %v575 = vpop.f32.mrf.mxu0
  %v576 = vadd.f32 %v452, %v575
  %v577 = vpop.f32.mrf.mxu0
  %v578 = vadd.f32 %v452, %v577
  %579 = vmatmul.bf16.gmra.mxu0 %v433
  %v580 = vpop.f32.mrf.mxu0
  %v581 = vadd.f32 %v452, %v580
  %v582 = vpop.f32.mrf.mxu0
  %v583 = vadd.f32 %v452, %v582
  %584 = vdwg.mxu0
  %585 = vmatpush.bf16.msra.mxu0 %v519
  %586 = vmatpush.bf16.msra.mxu0 %v517
  %587 = vmatpush.bf16.msra.mxu0 %v515
  %588 = vmatpush.bf16.msra.mxu0 %v513
  %589 = vmatpush.bf16.msra.mxu0 %v511
  %590 = vmatpush.bf16.msra.mxu0 %v509
  %591 = vmatpush.bf16.msra.mxu0 %v507
  %592 = vmatpush.bf16.msra.mxu0 %v505
  %593 = vmatmul.bf16.gmra.mxu0 %v426
  %v594 = vpop.f32.mrf.mxu0
  %v595 = vadd.f32 %v453, %v594
  %v596 = vpop.f32.mrf.mxu0
  %v597 = vadd.f32 %v453, %v596
  %598 = vmatmul.bf16.gmra.mxu0 %v427
  %v599 = vpop.f32.mrf.mxu0
  %v600 = vadd.f32 %v453, %v599
  %v601 = vpop.f32.mrf.mxu0
  %v602 = vadd.f32 %v453, %v601
  %603 = vmatmul.bf16.gmra.mxu0 %v428
  %v604 = vpop.f32.mrf.mxu0
  %v605 = vadd.f32 %v453, %v604
  %v606 = vpop.f32.mrf.mxu0
  %v607 = vadd.f32 %v453, %v606
  %608 = vmatmul.bf16.gmra.mxu0 %v429
  %v609 = vpop.f32.mrf.mxu0
  %v610 = vadd.f32 %v453, %v609
  %v611 = vpop.f32.mrf.mxu0
  %v612 = vadd.f32 %v453, %v611
  %613 = vmatmul.bf16.gmra.mxu0 %v430
  %v614 = vpop.f32.mrf.mxu0
  %v615 = vadd.f32 %v453, %v614
  %v616 = vpop.f32.mrf.mxu0
  %v617 = vadd.f32 %v453, %v616
  %618 = vmatmul.bf16.gmra.mxu0 %v431
  %v619 = vpop.f32.mrf.mxu0
  %v620 = vadd.f32 %v453, %v619
  %v621 = vpop.f32.mrf.mxu0
  %v622 = vadd.f32 %v453, %v621
  %623 = vmatmul.bf16.gmra.mxu0 %v432
  %v624 = vpop.f32.mrf.mxu0
  %v625 = vadd.f32 %v453, %v624
  %v626 = vpop.f32.mrf.mxu0
  %v627 = vadd.f32 %v453, %v626
  %628 = vmatmul.bf16.gmra.mxu0 %v433
  %v629 = vpop.f32.mrf.mxu0
  %v630 = vadd.f32 %v453, %v629
  %v631 = vpop.f32.mrf.mxu0
  %v632 = vadd.f32 %v453, %v631
  %633 = vdwg.mxu0
  %v634 = vld [vmem:[%s1] sm:$0xff]
  %v635 = vld [vmem:[%s1 + $0x8] sm:$0xff]
  %v636 = vld [vmem:[%s1 + $0x10] sm:$0xff]
  %v637 = vld [vmem:[%s1 + $0x18] sm:$0xff]
  %v638 = vld [vmem:[%s1 + $0x20] sm:$0xff]
  %v639 = vld [vmem:[%s1 + $0x28] sm:$0xff]
  %v640 = vld [vmem:[%s1 + $0x30] sm:$0xff]
  %v641 = vld [vmem:[%s1 + $0x38] sm:$0xff]
  %v642 = vld [vmem:[%s1 + $0x40] sm:$0xff]
  %v643 = vld [vmem:[%s1 + $0x48] sm:$0xff]
  %v644 = vld [vmem:[%s1 + $0x50] sm:$0xff]
  %v645 = vld [vmem:[%s1 + $0x58] sm:$0xff]
  %v646 = vld [vmem:[%s1 + $0x60] sm:$0xff]
  %v647 = vld [vmem:[%s1 + $0x68] sm:$0xff]
  %v648 = vld [vmem:[%s1 + $0x70] sm:$0xff]
  %v649 = vld [vmem:[%s1 + $0x78] sm:$0xff]
  %651 = vset.pattern.permute.xlu0 0
  %652 = vperm.xlu0 %651, %v634
  %v653 = vpop.permute.xlu0 %652
  %656 = vset.pattern.permute.xlu0 0
  %657 = vperm.xlu0 %656, %v635
  %v658 = vpop.permute.xlu0 %657
  %661 = vset.pattern.permute.xlu0 0
  %662 = vperm.xlu0 %661, %v636
  %v663 = vpop.permute.xlu0 %662
  %666 = vset.pattern.permute.xlu0 0
  %667 = vperm.xlu0 %666, %v637
  %v668 = vpop.permute.xlu0 %667
  %671 = vset.pattern.permute.xlu0 0
  %672 = vperm.xlu0 %671, %v638
  %v673 = vpop.permute.xlu0 %672
  %676 = vset.pattern.permute.xlu0 0
  %677 = vperm.xlu0 %676, %v639
  %v678 = vpop.permute.xlu0 %677
  %681 = vset.pattern.permute.xlu0 0
  %682 = vperm.xlu0 %681, %v640
  %v683 = vpop.permute.xlu0 %682
  %686 = vset.pattern.permute.xlu0 0
  %687 = vperm.xlu0 %686, %v641
  %v688 = vpop.permute.xlu0 %687
  %691 = vset.pattern.permute.xlu0 0
  %692 = vperm.xlu0 %691, %v642
  %v693 = vpop.permute.xlu0 %692
  %696 = vset.pattern.permute.xlu0 0
  %697 = vperm.xlu0 %696, %v643
  %v698 = vpop.permute.xlu0 %697
  %701 = vset.pattern.permute.xlu0 0
  %702 = vperm.xlu0 %701, %v644
  %v703 = vpop.permute.xlu0 %702
  %706 = vset.pattern.permute.xlu0 0
  %707 = vperm.xlu0 %706, %v645
  %v708 = vpop.permute.xlu0 %707
  %711 = vset.pattern.permute.xlu0 0
  %712 = vperm.xlu0 %711, %v646
  %v713 = vpop.permute.xlu0 %712
  %716 = vset.pattern.permute.xlu0 0
  %717 = vperm.xlu0 %716, %v647
  %v718 = vpop.permute.xlu0 %717
  %721 = vset.pattern.permute.xlu0 0
  %722 = vperm.xlu0 %721, %v648
  %v723 = vpop.permute.xlu0 %722
  %726 = vset.pattern.permute.xlu0 0
  %727 = vperm.xlu0 %726, %v649
  %v728 = vpop.permute.xlu0 %727
  %v730 = vadd.f32 %v595, %v653
  %v731 = vadd.f32 %v597, %v658
  %v732 = vadd.f32 %v600, %v663
  %v733 = vadd.f32 %v602, %v668
  %v734 = vadd.f32 %v605, %v673
  %v735 = vadd.f32 %v607, %v678
  %v736 = vadd.f32 %v610, %v683
  %v737 = vadd.f32 %v612, %v688
  %v738 = vadd.f32 %v615, %v693
  %v739 = vadd.f32 %v617, %v698
  %v740 = vadd.f32 %v620, %v703
  %v741 = vadd.f32 %v622, %v708
  %v742 = vadd.f32 %v625, %v713
  %v743 = vadd.f32 %v627, %v718
  %v744 = vadd.f32 %v630, %v723
  %v745 = vadd.f32 %v632, %v728
  %vm746 = vcmask 31744
  %v747 = vsel %vm746, %v730, -inf
  %v748 = vsel %vm746, %v731, -inf
  %v749 = vmax.f32 %v747, %v748
  %v750 = vrot.slane %v749, 4
  %v751 = vmax.f32 %v749, %v750
  %v752 = vrot.slane %v751, 2
  %v753 = vmax.f32 %v751, %v752
  %v754 = vrot.slane %v753, 1
  %v755 = vmax.f32 %v753, %v754
  %v756 = vsel %vm746, %v732, -inf
  %v757 = vsel %vm746, %v733, -inf
  %v758 = vmax.f32 %v756, %v757
  %v759 = vrot.slane %v758, 4
  %v760 = vmax.f32 %v758, %v759
  %v761 = vrot.slane %v760, 2
  %v762 = vmax.f32 %v760, %v761
  %v763 = vrot.slane %v762, 1
  %v764 = vmax.f32 %v762, %v763
  %v765 = vsel %vm746, %v734, -inf
  %v766 = vsel %vm746, %v735, -inf
  %v767 = vmax.f32 %v765, %v766
  %v768 = vrot.slane %v767, 4
  %v769 = vmax.f32 %v767, %v768
  %v770 = vrot.slane %v769, 2
  %v771 = vmax.f32 %v769, %v770
  %v772 = vrot.slane %v771, 1
  %v773 = vmax.f32 %v771, %v772
  %v774 = vsel %vm746, %v736, -inf
  %v775 = vsel %vm746, %v737, -inf
  %v776 = vmax.f32 %v774, %v775
  %v777 = vrot.slane %v776, 4
  %v778 = vmax.f32 %v776, %v777
  %v779 = vrot.slane %v778, 2
  %v780 = vmax.f32 %v778, %v779
  %v781 = vrot.slane %v780, 1
  %v782 = vmax.f32 %v780, %v781
  %v783 = vsel %vm746, %v738, -inf
  %v784 = vsel %vm746, %v739, -inf
  %v785 = vmax.f32 %v783, %v784
  %v786 = vrot.slane %v785, 4
  %v787 = vmax.f32 %v785, %v786
  %v788 = vrot.slane %v787, 2
  %v789 = vmax.f32 %v787, %v788
  %v790 = vrot.slane %v789, 1
  %v791 = vmax.f32 %v789, %v790
  %v792 = vsel %vm746, %v740, -inf
  %v793 = vsel %vm746, %v741, -inf
  %v794 = vmax.f32 %v792, %v793
  %v795 = vrot.slane %v794, 4
  %v796 = vmax.f32 %v794, %v795
  %v797 = vrot.slane %v796, 2
  %v798 = vmax.f32 %v796, %v797
  %v799 = vrot.slane %v798, 1
  %v800 = vmax.f32 %v798, %v799
  %v801 = vsel %vm746, %v742, -inf
  %v802 = vsel %vm746, %v743, -inf
  %v803 = vmax.f32 %v801, %v802
  %v804 = vrot.slane %v803, 4
  %v805 = vmax.f32 %v803, %v804
  %v806 = vrot.slane %v805, 2
  %v807 = vmax.f32 %v805, %v806
  %v808 = vrot.slane %v807, 1
  %v809 = vmax.f32 %v807, %v808
  %v810 = vsel %vm746, %v744, -inf
  %v811 = vsel %vm746, %v745, -inf
  %v812 = vmax.f32 %v810, %v811
  %v813 = vrot.slane %v812, 4
  %v814 = vmax.f32 %v812, %v813
  %v815 = vrot.slane %v814, 2
  %v816 = vmax.f32 %v814, %v815
  %v817 = vrot.slane %v816, 1
  %v818 = vmax.f32 %v816, %v817
  %v819 = vsub.f32 %v730, %v755
  %v820 = vsub.f32 %v731, %v755
  %v821 = vsub.f32 %v732, %v764
  %v822 = vsub.f32 %v733, %v764
  %v823 = vsub.f32 %v734, %v773
  %v824 = vsub.f32 %v735, %v773
  %v825 = vsub.f32 %v736, %v782
  %v826 = vsub.f32 %v737, %v782
  %v827 = vsub.f32 %v738, %v791
  %v828 = vsub.f32 %v739, %v791
  %v829 = vsub.f32 %v740, %v800
  %v830 = vsub.f32 %v741, %v800
  %v831 = vsub.f32 %v742, %v809
  %v832 = vsub.f32 %v743, %v809
  %v833 = vsub.f32 %v744, %v818
  %v834 = vsub.f32 %v745, %v818
  %v835 = vmul.f32 %v819, 1.442695
  %v836 = vpow.pop %v835
  %v837 = vmul.f32 %v820, 1.442695
  %v838 = vpow.pop %v837
  %v839 = vmul.f32 %v821, 1.442695
  %v840 = vpow.pop %v839
  %v841 = vmul.f32 %v822, 1.442695
  %v842 = vpow.pop %v841
  %v843 = vmul.f32 %v823, 1.442695
  %v844 = vpow.pop %v843
  %v845 = vmul.f32 %v824, 1.442695
  %v846 = vpow.pop %v845
  %v847 = vmul.f32 %v825, 1.442695
  %v848 = vpow.pop %v847
  %v849 = vmul.f32 %v826, 1.442695
  %v850 = vpow.pop %v849
  %v851 = vmul.f32 %v827, 1.442695
  %v852 = vpow.pop %v851
  %v853 = vmul.f32 %v828, 1.442695
  %v854 = vpow.pop %v853
  %v855 = vmul.f32 %v829, 1.442695
  %v856 = vpow.pop %v855
  %v857 = vmul.f32 %v830, 1.442695
  %v858 = vpow.pop %v857
  %v859 = vmul.f32 %v831, 1.442695
  %v860 = vpow.pop %v859
  %v861 = vmul.f32 %v832, 1.442695
  %v862 = vpow.pop %v861
  %v863 = vmul.f32 %v833, 1.442695
  %v864 = vpow.pop %v863
  %v865 = vmul.f32 %v834, 1.442695
  %v866 = vpow.pop %v865
  %v867 = vsel %vm746, %v836, 0.0
  %v868 = vsel %vm746, %v838, 0.0
  %v869 = vadd.f32 %v867, %v868
  %v870 = vrot.slane %v869, 4
  %v871 = vadd.f32 %v869, %v870
  %v872 = vrot.slane %v871, 2
  %v873 = vadd.f32 %v871, %v872
  %v874 = vrot.slane %v873, 1
  %v875 = vadd.f32 %v873, %v874
  %v876 = vsel %vm746, %v840, 0.0
  %v877 = vsel %vm746, %v842, 0.0
  %v878 = vadd.f32 %v876, %v877
  %v879 = vrot.slane %v878, 4
  %v880 = vadd.f32 %v878, %v879
  %v881 = vrot.slane %v880, 2
  %v882 = vadd.f32 %v880, %v881
  %v883 = vrot.slane %v882, 1
  %v884 = vadd.f32 %v882, %v883
  %v885 = vsel %vm746, %v844, 0.0
  %v886 = vsel %vm746, %v846, 0.0
  %v887 = vadd.f32 %v885, %v886
  %v888 = vrot.slane %v887, 4
  %v889 = vadd.f32 %v887, %v888
  %v890 = vrot.slane %v889, 2
  %v891 = vadd.f32 %v889, %v890
  %v892 = vrot.slane %v891, 1
  %v893 = vadd.f32 %v891, %v892
  %v894 = vsel %vm746, %v848, 0.0
  %v895 = vsel %vm746, %v850, 0.0
  %v896 = vadd.f32 %v894, %v895
  %v897 = vrot.slane %v896, 4
  %v898 = vadd.f32 %v896, %v897
  %v899 = vrot.slane %v898, 2
  %v900 = vadd.f32 %v898, %v899
  %v901 = vrot.slane %v900, 1
  %v902 = vadd.f32 %v900, %v901
  %v903 = vsel %vm746, %v852, 0.0
  %v904 = vsel %vm746, %v854, 0.0
  %v905 = vadd.f32 %v903, %v904
  %v906 = vrot.slane %v905, 4
  %v907 = vadd.f32 %v905, %v906
  %v908 = vrot.slane %v907, 2
  %v909 = vadd.f32 %v907, %v908
  %v910 = vrot.slane %v909, 1
  %v911 = vadd.f32 %v909, %v910
  %v912 = vsel %vm746, %v856, 0.0
  %v913 = vsel %vm746, %v858, 0.0
  %v914 = vadd.f32 %v912, %v913
  %v915 = vrot.slane %v914, 4
  %v916 = vadd.f32 %v914, %v915
  %v917 = vrot.slane %v916, 2
  %v918 = vadd.f32 %v916, %v917
  %v919 = vrot.slane %v918, 1
  %v920 = vadd.f32 %v918, %v919
  %v921 = vsel %vm746, %v860, 0.0
  %v922 = vsel %vm746, %v862, 0.0
  %v923 = vadd.f32 %v921, %v922
  %v924 = vrot.slane %v923, 4
  %v925 = vadd.f32 %v923, %v924
  %v926 = vrot.slane %v925, 2
  %v927 = vadd.f32 %v925, %v926
  %v928 = vrot.slane %v927, 1
  %v929 = vadd.f32 %v927, %v928
  %v930 = vsel %vm746, %v864, 0.0
  %v931 = vsel %vm746, %v866, 0.0
  %v932 = vadd.f32 %v930, %v931
  %v933 = vrot.slane %v932, 4
  %v934 = vadd.f32 %v932, %v933
  %v935 = vrot.slane %v934, 2
  %v936 = vadd.f32 %v934, %v935
  %v937 = vrot.slane %v936, 1
  %v938 = vadd.f32 %v936, %v937
  %v939 = vrcp.pop %v875
  %v940 = vrcp.pop %v884
  %v941 = vrcp.pop %v893
  %v942 = vrcp.pop %v902
  %v943 = vrcp.pop %v911
  %v944 = vrcp.pop %v920
  %v945 = vrcp.pop %v929
  %v946 = vrcp.pop %v938
  %v947 = vmul.f32 %v836, %v939
  %v948 = vmul.f32 %v838, %v939
  %v949 = vmul.f32 %v840, %v940
  %v950 = vmul.f32 %v842, %v940
  %v951 = vmul.f32 %v844, %v941
  %v952 = vmul.f32 %v846, %v941
  %v953 = vmul.f32 %v848, %v942
  %v954 = vmul.f32 %v850, %v942
  %v955 = vmul.f32 %v852, %v943
  %v956 = vmul.f32 %v854, %v943
  %v957 = vmul.f32 %v856, %v944
  %v958 = vmul.f32 %v858, %v944
  %v959 = vmul.f32 %v860, %v945
  %v960 = vmul.f32 %v862, %v945
  %v961 = vmul.f32 %v864, %v946
  %v962 = vmul.f32 %v866, %v946
  %v963 = vpack.c.bf16 %v948, %v947
  %v964 = vpack.c.bf16 %v950, %v949
  %v965 = vpack.c.bf16 %v952, %v951
  %v966 = vpack.c.bf16 %v954, %v953
  %v967 = vpack.c.bf16 %v956, %v955
  %v968 = vpack.c.bf16 %v958, %v957
  %v969 = vpack.c.bf16 %v960, %v959
  %v970 = vpack.c.bf16 %v962, %v961
  %v971 = vld [vmem:[%s6] sm:$0x3]
  %v973 = vsel %vm746, %v963, 0
  %v976 = vsel %vm746, %v964, 0
  %v979 = vsel %vm746, %v965, 0
  %v982 = vsel %vm746, %v966, 0
  %v985 = vsel %vm746, %v967, 0
  %v988 = vsel %vm746, %v968, 0
  %v991 = vsel %vm746, %v969, 0
  %v994 = vsel %vm746, %v970, 0
  %vm996 = vcmask 1041408
  %v998 = vsel %vm996, %v971, 0
  %1000 = vmatpush.bf16.msra.mxu0 0
  %1001 = vmatpush.bf16.msra.mxu0 0
  %1002 = vmatpush.bf16.msra.mxu0 0
  %1003 = vmatpush.bf16.msra.mxu0 0
  %1004 = vmatpush.bf16.msra.mxu0 0
  %1005 = vmatpush.bf16.msra.mxu0 0
  %1006 = vmatpush.bf16.msra.mxu0 0
  %1007 = vmatpush.bf16.msra.mxu0 %v998
  %1008 = vmatmul.bf16.gmra.mxu0 %v973
  %v1009 = vpop.f32.mrf.mxu0
  %v1010 = vadd.f32 0.0, %v1009
  %v1011 = vpop.f32.mrf.mxu0
  %v1012 = vadd.f32 0.0, %v1011
  %1013 = vmatmul.bf16.gmra.mxu0 %v976
  %v1014 = vpop.f32.mrf.mxu0
  %v1015 = vadd.f32 0.0, %v1014
  %v1016 = vpop.f32.mrf.mxu0
  %v1017 = vadd.f32 0.0, %v1016
  %1018 = vmatmul.bf16.gmra.mxu0 %v979
  %v1019 = vpop.f32.mrf.mxu0
  %v1020 = vadd.f32 0.0, %v1019
  %v1021 = vpop.f32.mrf.mxu0
  %v1022 = vadd.f32 0.0, %v1021
  %1023 = vmatmul.bf16.gmra.mxu0 %v982
  %v1024 = vpop.f32.mrf.mxu0
  %v1025 = vadd.f32 0.0, %v1024
  %v1026 = vpop.f32.mrf.mxu0
  %v1027 = vadd.f32 0.0, %v1026
  %1028 = vmatmul.bf16.gmra.mxu0 %v985
  %v1029 = vpop.f32.mrf.mxu0
  %v1030 = vadd.f32 0.0, %v1029
  %v1031 = vpop.f32.mrf.mxu0
  %v1032 = vadd.f32 0.0, %v1031
  %1033 = vmatmul.bf16.gmra.mxu0 %v988
  %v1034 = vpop.f32.mrf.mxu0
  %v1035 = vadd.f32 0.0, %v1034
  %v1036 = vpop.f32.mrf.mxu0
  %v1037 = vadd.f32 0.0, %v1036
  %1038 = vmatmul.bf16.gmra.mxu0 %v991
  %v1039 = vpop.f32.mrf.mxu0
  %v1040 = vadd.f32 0.0, %v1039
  %v1041 = vpop.f32.mrf.mxu0
  %v1042 = vadd.f32 0.0, %v1041
  %1043 = vmatmul.bf16.gmra.mxu0 %v994
  %v1044 = vpop.f32.mrf.mxu0
  %v1045 = vadd.f32 0.0, %v1044
  %v1046 = vpop.f32.mrf.mxu0
  %v1047 = vadd.f32 0.0, %v1046
  %1048 = vdwg.mxu0
  %v1049 = vmul.f32 %v1010, %v546
  %v1050 = vmul.f32 %v1012, %v548
  %v1051 = vmul.f32 %v1015, %v551
  %v1052 = vmul.f32 %v1017, %v553
  %v1053 = vmul.f32 %v1020, %v556
  %v1054 = vmul.f32 %v1022, %v558
  %v1055 = vmul.f32 %v1025, %v561
  %v1056 = vmul.f32 %v1027, %v563
  %v1057 = vmul.f32 %v1030, %v566
  %v1058 = vmul.f32 %v1032, %v568
  %v1059 = vmul.f32 %v1035, %v571
  %v1060 = vmul.f32 %v1037, %v573
  %v1061 = vmul.f32 %v1040, %v576
  %v1062 = vmul.f32 %v1042, %v578
  %v1063 = vmul.f32 %v1045, %v581
  %v1064 = vmul.f32 %v1047, %v583
  %v1065 = vadd.f32 %v1049, %v1050
  %v1066 = vrot.slane %v1065, 4
  %v1067 = vadd.f32 %v1065, %v1066
  %v1068 = vrot.slane %v1067, 2
  %v1069 = vadd.f32 %v1067, %v1068
  %v1070 = vrot.slane %v1069, 1
  %v1071 = vadd.f32 %v1069, %v1070
  %v1072 = vadd.f32 %v1051, %v1052
  %v1073 = vrot.slane %v1072, 4
  %v1074 = vadd.f32 %v1072, %v1073
  %v1075 = vrot.slane %v1074, 2
  %v1076 = vadd.f32 %v1074, %v1075
  %v1077 = vrot.slane %v1076, 1
  %v1078 = vadd.f32 %v1076, %v1077
  %v1079 = vadd.f32 %v1053, %v1054
  %v1080 = vrot.slane %v1079, 4
  %v1081 = vadd.f32 %v1079, %v1080
  %v1082 = vrot.slane %v1081, 2
  %v1083 = vadd.f32 %v1081, %v1082
  %v1084 = vrot.slane %v1083, 1
  %v1085 = vadd.f32 %v1083, %v1084
  %v1086 = vadd.f32 %v1055, %v1056
  %v1087 = vrot.slane %v1086, 4
  %v1088 = vadd.f32 %v1086, %v1087
  %v1089 = vrot.slane %v1088, 2
  %v1090 = vadd.f32 %v1088, %v1089
  %v1091 = vrot.slane %v1090, 1
  %v1092 = vadd.f32 %v1090, %v1091
  %v1093 = vadd.f32 %v1057, %v1058
  %v1094 = vrot.slane %v1093, 4
  %v1095 = vadd.f32 %v1093, %v1094
  %v1096 = vrot.slane %v1095, 2
  %v1097 = vadd.f32 %v1095, %v1096
  %v1098 = vrot.slane %v1097, 1
  %v1099 = vadd.f32 %v1097, %v1098
  %v1100 = vadd.f32 %v1059, %v1060
  %v1101 = vrot.slane %v1100, 4
  %v1102 = vadd.f32 %v1100, %v1101
  %v1103 = vrot.slane %v1102, 2
  %v1104 = vadd.f32 %v1102, %v1103
  %v1105 = vrot.slane %v1104, 1
  %v1106 = vadd.f32 %v1104, %v1105
  %v1107 = vadd.f32 %v1061, %v1062
  %v1108 = vrot.slane %v1107, 4
  %v1109 = vadd.f32 %v1107, %v1108
  %v1110 = vrot.slane %v1109, 2
  %v1111 = vadd.f32 %v1109, %v1110
  %v1112 = vrot.slane %v1111, 1
  %v1113 = vadd.f32 %v1111, %v1112
  %v1114 = vadd.f32 %v1063, %v1064
  %v1115 = vrot.slane %v1114, 4
  %v1116 = vadd.f32 %v1114, %v1115
  %v1117 = vrot.slane %v1116, 2
  %v1118 = vadd.f32 %v1116, %v1117
  %v1119 = vrot.slane %v1118, 1
  %v1120 = vadd.f32 %v1118, %v1119
  %vm1129 = vcmask 1041409
  %v1130 = vsel %vm1129, %v1078, %v1071
  %vm1131 = vcmask 1042434
  %v1132 = vsel %vm1131, %v1085, %v1130
  %vm1133 = vcmask 1043459
  %v1134 = vsel %vm1133, %v1092, %v1132
  %vm1135 = vcmask 1044484
  %v1136 = vsel %vm1135, %v1099, %v1134
  %vm1137 = vcmask 1045509
  %v1138 = vsel %vm1137, %v1106, %v1136
  %vm1139 = vcmask 1046534
  %v1140 = vsel %vm1139, %v1113, %v1138
  %vm1141 = vcmask 1047559
  %v1142 = vsel %vm1141, %v1120, %v1140
  %1144 = vst [vmem:[%s7] sm:$0xff] %v1142
  // Predicated region
  $region30: #{transformer_pooling_layer.2} parent=0 // pred_check
    _
  $region31: #{transformer_pooling_layer.2} parent=0 // pred_check_branch
    %1146 = sbr.rel (0) target = $region33
  $region32: #{transformer_pooling_layer.2} parent=0 // pred_region
    _
  $region33: #{transformer_pooling_layer.2} parent=0 // pred_fallthru
    _
  // Predicated region
  $region34: #{transformer_pooling_layer.2} parent=0 // pred_check
    _
  $region35: #{transformer_pooling_layer.2} parent=0 // pred_check_branch
    %1148 = sbr.rel (0) target = $region37
  $region36: #{transformer_pooling_layer.2} parent=0 // pred_region
    _
  $region37: #{transformer_pooling_layer.2} parent=0 // pred_fallthru
    _

</llo_original>
